<compile_context>
chip_gen: v6e
topology: v6e:2x2x1
jax: 0.10.0
libtpu: 0.0.40
codegen_flags: <defaults>
</compile_context>

<pallas_src>
import functools

import numpy as np
import jax
import jax.numpy as jnp
from jax.experimental import pallas as pl
from jax.experimental.pallas import tpu as pltpu


KK2, KK4, KK1 = 4, 16, 1          # pyramid cells for k=2, k=4, k=1
KK = KK2 + KK4 + KK1              # 21 packed pyramid cells
KKP = 24                          # padded to a sublane multiple (zero columns/rows are inert)
_BN_EPS = 1e-5


# ----------------------------------------------------------------------------
# Host-side glue: adaptive-avg-pool and bilinear-interpolation matrices
# ----------------------------------------------------------------------------
def adaptive_pool_matrix(H, W, k):
    """P_k of shape (k*k, H*W): pooled_flat = P_k @ x_flat (AdaptiveAvgPool2d(k))."""
    P = np.zeros((k * k, H * W), dtype=np.float32)
    for i in range(k):
        hs = (i * H) // k
        he = -((-(i + 1) * H) // k)          # ceil((i+1)*H/k)
        for j in range(k):
            ws = (j * W) // k
            we = -((-(j + 1) * W) // k)
            n = float((he - hs) * (we - ws))
            for h in range(hs, he):
                for w in range(ws, we):
                    P[i * k + j, h * W + w] = 1.0 / n
    return P


def bilinear_1d(out_size, in_size):
    """1-D bilinear resize matrix, PyTorch align_corners=False convention."""
    R = np.zeros((out_size, in_size), dtype=np.float32)
    if in_size == 1:
        R[:, 0] = 1.0
        return R
    scale = in_size / out_size
    for o in range(out_size):
        src = (o + 0.5) * scale - 0.5
        src = max(src, 0.0)
        i0 = min(int(np.floor(src)), in_size - 1)
        i1 = min(i0 + 1, in_size - 1)
        lam = src - i0
        R[o, i0] += 1.0 - lam
        R[o, i1] += lam
    return R


def interp_matrix(H, W, k):
    """M_k of shape (H*W, k*k): upsampled_flat = M_k @ y_flat."""
    Rh = bilinear_1d(H, k)
    Rw = bilinear_1d(W, k)
    return np.einsum("ai,bj->abij", Rh, Rw).reshape(H * W, k * k).astype(np.float32)


@functools.lru_cache(maxsize=None)
def _pyramid_constants(H, W):
    """Cached, device-resident constant matrices for a given spatial size."""
    HW = H * W
    P2 = adaptive_pool_matrix(H, W, 2)          # (4, HW)
    P4 = adaptive_pool_matrix(H, W, 4)          # (16, HW)
    M2 = interp_matrix(H, W, 2)                 # (HW, 4)
    M4 = interp_matrix(H, W, 4)                 # (HW, 16)

    pcat = np.zeros((HW, KKP), np.float32)      # fused pooling matrix (k=2 | k=4 | k=1 | pad)
    pcat[:, 0:KK2] = P2.T
    pcat[:, KK2:KK2 + KK4] = P4.T
    pcat[:, KK2 + KK4] = 1.0 / HW               # AdaptiveAvgPool2d(1)

    mcat = np.zeros((KKP, HW), np.float32)      # fused bilinear-upsample matrix
    mcat[0:KK2, :] = M2.T
    mcat[KK2:KK2 + KK4, :] = M4.T
    mcat[KK2 + KK4, :] = 1.0                    # upsample of a 1x1 map = broadcast

    sel = np.zeros((3, KKP), np.float32)        # per-branch column-selection masks
    sel[0, 0:KK2] = 1.0
    sel[1, KK2:KK2 + KK4] = 1.0
    sel[2, KK2 + KK4] = 1.0

    return (jnp.asarray(pcat).astype(jnp.bfloat16),
            jnp.asarray(mcat).astype(jnp.bfloat16),
            jnp.asarray(sel))


# ----------------------------------------------------------------------------
# Pallas kernel: block of `nb` batch elements, NCHW-native (C, HW) layout
# ----------------------------------------------------------------------------
def _psa_kernel(x_ref, pcat_ref, wcat_ref, mcat_ref, scat_ref, sel_ref, o_ref):
    nb, C, _ = x_ref.shape

    pcat = pcat_ref[...]                                           # (HW, KKP)  bf16
    wcat = wcat_ref[...]                                           # (3C, C)    bf16
    mcat = mcat_ref[...]                                           # (KKP, HW)  bf16
    scat = scat_ref[...]                                           # (C, KKP)   f32 (folded bias)
    sel = sel_ref[...]                                             # (3, KKP)   f32

    for b in range(nb):                                            # static unroll over the block
        x = x_ref[b]                                               # (C, HW) f32

        # 1) fused pyramid pooling (k = 2, 4, 1) — one MXU pass
        pooled = jnp.dot(x.astype(jnp.bfloat16), pcat,
                         preferred_element_type=jnp.float32)       # (C, KKP)

        # 2) all three 1x1 convs (BN folded) as one stacked matmul
        conv_full = jnp.dot(wcat, pooled.astype(jnp.bfloat16),
                            preferred_element_type=jnp.float32)    # (3C, KKP)

        # 3) per-branch selection (cheap VPU column masks), folded bias, ReLU
        conv = (conv_full[0:C, :] * sel[0:1, :]
                + conv_full[C:2 * C, :] * sel[1:2, :]
                + conv_full[2 * C:3 * C, :] * sel[2:3, :])
        act = jnp.maximum(conv + scat, 0.0)                        # (C, KKP)

        # 4) fused bilinear upsample of all three branches — one MXU pass
        up = jnp.dot(act.astype(jnp.bfloat16), mcat,
                     preferred_element_type=jnp.float32)           # (C, HW)

        # 5) sigmoid gate on the EUP (tanh form), multiply, f32 writeback
        gate = 0.5 * (jnp.tanh(0.5 * up) + 1.0)
        o_ref[b] = x * gate


# ----------------------------------------------------------------------------
# Wrapper
# ----------------------------------------------------------------------------
def _pick_block_b(B, max_pack=8):
    """Largest divisor of B (<= max_pack) that still leaves >= 2 grid steps, so both
    v7x TensorCores get work; packing amortizes per-grid-step overhead at large B."""
    best = 1
    for d in range(1, min(B, max_pack) + 1):
        if B % d == 0 and (B // d >= 2 or B == 1):
            best = d
    return best


@functools.partial(jax.jit, static_argnames=("block_b",))
def _psa_forward(x_nchw, pcat, mcat, sel, params, *, block_b):
    B, C, H, W = x_nchw.shape
    HW = H * W
    x3 = x_nchw.reshape(B, C, HW)                 # free reshape — stays NCHW-native

    # Fold eval-mode BatchNorm + conv bias into the 1x1-conv weights (per output channel).
    scale = params["gamma"] / jnp.sqrt(params["running_var"] + _BN_EPS)
    shift = params["beta"] - params["running_mean"] * scale

    def fold_w(w):                                # (C_out, C_in), BN scale folded in
        return (w * scale[:, None]).astype(jnp.bfloat16)

    def fold_b(b):
        return b * scale + shift

    wcat = jnp.concatenate([fold_w(params["w2"]),
                            fold_w(params["w4"]),
                            fold_w(params["w1"])], axis=0)          # (3C, C) bf16

    scat = jnp.concatenate([
        jnp.broadcast_to(fold_b(params["b2"])[:, None], (C, KK2)),
        jnp.broadcast_to(fold_b(params["b4"])[:, None], (C, KK4)),
        fold_b(params["b1"])[:, None],
        jnp.zeros((C, KKP - KK), jnp.float32),
    ], axis=1)                                                      # (C, KKP) f32

    grid = (B // block_b,)
    out = pl.pallas_call(
        _psa_kernel,
        out_shape=jax.ShapeDtypeStruct((B, C, HW), jnp.float32),
        grid_spec=pltpu.PrefetchScalarGridSpec(
            num_scalar_prefetch=0,
            grid=grid,
            in_specs=[
                pl.BlockSpec((block_b, C, HW), lambda b: (b, 0, 0)),   # x
                pl.BlockSpec((HW, KKP), lambda b: (0, 0)),             # pcat   (constant)
                pl.BlockSpec((3 * C, C), lambda b: (0, 0)),            # wcat   (constant)
                pl.BlockSpec((KKP, HW), lambda b: (0, 0)),             # mcat   (constant)
                pl.BlockSpec((C, KKP), lambda b: (0, 0)),              # scat   (constant)
                pl.BlockSpec((3, KKP), lambda b: (0, 0)),              # sel    (constant)
            ],
            out_specs=pl.BlockSpec((block_b, C, HW), lambda b: (b, 0, 0)),
        ),
        compiler_params=pltpu.CompilerParams(dimension_semantics=("parallel",)),
    )(x3, pcat, wcat, mcat, scat, sel)
    return out.reshape(B, C, H, W)                # free reshape


def pyramid_spatial_attention(x_nchw, params, block_b=None):
    B, C, H, W = x_nchw.shape
    pcat, mcat, sel = _pyramid_constants(H, W)
    if block_b is None:
        block_b = _pick_block_b(B)
    return _psa_forward(x_nchw, pcat, mcat, sel, params, block_b=block_b)


# ----------------------------------------------------------------------------
# Pure-JAX reference (unfused math, BN not folded, full f32) for a sanity check
# ----------------------------------------------------------------------------
def reference(x_nchw, params):
    B, C, H, W = x_nchw.shape
    HW = H * W
    x = x_nchw.reshape(B, C, HW)
    scale = params["gamma"] / jnp.sqrt(params["running_var"] + _BN_EPS)
    shift = params["beta"] - params["running_mean"] * scale

    def branch(k, wgt, bias):
        P = jnp.asarray(adaptive_pool_matrix(H, W, k))   # (kk, HW)
        M = jnp.asarray(interp_matrix(H, W, k))          # (HW, kk)
        pooled = jnp.einsum("bcs,ks->bck", x, P)
        conv = jnp.einsum("oc,bck->bok", wgt, pooled) + bias[None, :, None]
        act = jnp.maximum(conv * scale[None, :, None] + shift[None, :, None], 0.0)
        return jnp.einsum("sk,bok->bos", M, act)

    out = (branch(1, params["w1"], params["b1"])
           + branch(2, params["w2"], params["b2"])
           + branch(4, params["w4"], params["b4"]))
    y = x * jax.nn.sigmoid(out)
    return y.reshape(B, C, H, W)


if __name__ == "__main__":
    B, C, H, W = 2, 256, 16, 16   # conv layers in the module are fixed at 256 channels
    key = jax.random.PRNGKey(0)
    ks = jax.random.split(key, 10)

    x = jax.random.normal(ks[0], (B, C, H, W), dtype=jnp.float32)

    params = {
        "w1": 0.05 * jax.random.normal(ks[1], (C, C), dtype=jnp.float32),
        "w2": 0.05 * jax.random.normal(ks[2], (C, C), dtype=jnp.float32),
        "w4": 0.05 * jax.random.normal(ks[3], (C, C), dtype=jnp.float32),
        "b1": 0.1 * jax.random.normal(ks[4], (C,), dtype=jnp.float32),
        "b2": 0.1 * jax.random.normal(ks[5], (C,), dtype=jnp.float32),
        "b4": 0.1 * jax.random.normal(ks[6], (C,), dtype=jnp.float32),
        "gamma": 1.0 + 0.1 * jax.random.normal(ks[7], (C,), dtype=jnp.float32),
        "beta": 0.1 * jax.random.normal(ks[8], (C,), dtype=jnp.float32),
        "running_mean": jnp.zeros((C,), dtype=jnp.float32),
        "running_var": jnp.ones((C,), dtype=jnp.float32),
    }

    y = jax.block_until_ready(pyramid_spatial_attention(x, params))
    y_ref = jax.block_until_ready(reference(x, params))

    assert y.shape == (B, C, H, W)
    # bf16 matmul operands (f32 accumulation) -> tolerance loosened per review.
    np.testing.assert_allclose(np.asarray(y), np.asarray(y_ref), rtol=2e-2, atol=2e-2)
    print("KERNEL_OK")
</pallas_src>

<mosaic_0001>
module attributes {stable_mosaic.version = 11 : i64} {
  func.func @_psa_kernel(%arg0: i32, %arg1: memref<1x256x256xf32, #tpu.memory_space<vmem>>, %arg2: memref<256x24xbf16, #tpu.memory_space<vmem>>, %arg3: memref<768x256xbf16, #tpu.memory_space<vmem>>, %arg4: memref<24x256xbf16, #tpu.memory_space<vmem>>, %arg5: memref<256x24xf32, #tpu.memory_space<vmem>>, %arg6: memref<3x24xf32, #tpu.memory_space<vmem>>, %arg7: memref<1x256x256xf32, #tpu.memory_space<vmem>>) attributes {dimension_semantics = [#tpu.dimension_semantics<parallel>], iteration_bounds = array<i64: 2>, scalar_prefetch = 0 : i64, scratch_operands = 0 : i64, tpu.core_type = #tpu.core_type<tc>, window_params = [{transform_indices = @transform_0, window_bounds = array<i64: 1, 256, 256>}, {pipeline_mode = #tpu.pipeline_mode<synchronous>, transform_indices = @transform_1, window_bounds = array<i64: 256, 24>}, {pipeline_mode = #tpu.pipeline_mode<synchronous>, transform_indices = @transform_2, window_bounds = array<i64: 768, 256>}, {pipeline_mode = #tpu.pipeline_mode<synchronous>, transform_indices = @transform_3, window_bounds = array<i64: 24, 256>}, {pipeline_mode = #tpu.pipeline_mode<synchronous>, transform_indices = @transform_4, window_bounds = array<i64: 256, 24>}, {pipeline_mode = #tpu.pipeline_mode<synchronous>, transform_indices = @transform_5, window_bounds = array<i64: 3, 24>}, {transform_indices = @transform_6, window_bounds = array<i64: 1, 256, 256>}]} {
    %c0 = arith.constant 0 : index
    %c0_0 = arith.constant 0 : index
    %0 = vector.load %arg2[%c0, %c0_0] : memref<256x24xbf16, #tpu.memory_space<vmem>>, vector<256x24xbf16>
    %c0_1 = arith.constant 0 : index
    %c0_2 = arith.constant 0 : index
    %1 = vector.load %arg3[%c0_1, %c0_2] : memref<768x256xbf16, #tpu.memory_space<vmem>>, vector<768x256xbf16>
    %c0_3 = arith.constant 0 : index
    %c0_4 = arith.constant 0 : index
    %2 = vector.load %arg4[%c0_3, %c0_4] : memref<24x256xbf16, #tpu.memory_space<vmem>>, vector<24x256xbf16>
    %c0_5 = arith.constant 0 : index
    %c0_6 = arith.constant 0 : index
    %3 = vector.load %arg5[%c0_5, %c0_6] : memref<256x24xf32, #tpu.memory_space<vmem>>, vector<256x24xf32>
    %c0_7 = arith.constant 0 : index
    %c0_8 = arith.constant 0 : index
    %4 = vector.load %arg6[%c0_7, %c0_8] : memref<3x24xf32, #tpu.memory_space<vmem>>, vector<3x24xf32>
    %c0_9 = arith.constant 0 : index
    %c0_10 = arith.constant 0 : index
    %c0_11 = arith.constant 0 : index
    %5 = vector.load %arg1[%c0_9, %c0_10, %c0_11] : memref<1x256x256xf32, #tpu.memory_space<vmem>>, vector<1x256x256xf32>
    %6 = vector.shape_cast %5 : vector<1x256x256xf32> to vector<256x256xf32>
    %7 = arith.truncf %6 : vector<256x256xf32> to vector<256x256xbf16>
    %cst = arith.constant dense<0.000000e+00> : vector<256x24xf32>
    %8 = tpu.matmul %7, %0, %cst {dimension_numbers = #tpu.dot_dimension_numbers<[1], [0], [0], [1], [0, 0, 1, 1], [], []>} : vector<256x256xbf16>, vector<256x24xbf16>, vector<256x24xf32> -> vector<256x24xf32>
    %9 = arith.truncf %8 : vector<256x24xf32> to vector<256x24xbf16>
    %cst_12 = arith.constant dense<0.000000e+00> : vector<768x24xf32>
    %10 = tpu.matmul %1, %9, %cst_12 {dimension_numbers = #tpu.dot_dimension_numbers<[1], [0], [0], [1], [0, 0, 1, 1], [], []>} : vector<768x256xbf16>, vector<256x24xbf16>, vector<768x24xf32> -> vector<768x24xf32>
    %11 = vector.extract_strided_slice %10 {offsets = [0, 0], sizes = [256, 24], strides = [1, 1]} : vector<768x24xf32> to vector<256x24xf32>
    %12 = vector.extract_strided_slice %4 {offsets = [0, 0], sizes = [1, 24], strides = [1, 1]} : vector<3x24xf32> to vector<1x24xf32>
    %13 = vector.broadcast %12 : vector<1x24xf32> to vector<256x24xf32>
    %14 = arith.mulf %11, %13 : vector<256x24xf32>
    %15 = vector.extract_strided_slice %10 {offsets = [256, 0], sizes = [256, 24], strides = [1, 1]} : vector<768x24xf32> to vector<256x24xf32>
    %16 = vector.extract_strided_slice %4 {offsets = [1, 0], sizes = [1, 24], strides = [1, 1]} : vector<3x24xf32> to vector<1x24xf32>
    %17 = vector.broadcast %16 : vector<1x24xf32> to vector<256x24xf32>
    %18 = arith.mulf %15, %17 : vector<256x24xf32>
    %19 = arith.addf %14, %18 : vector<256x24xf32>
    %20 = vector.extract_strided_slice %10 {offsets = [512, 0], sizes = [256, 24], strides = [1, 1]} : vector<768x24xf32> to vector<256x24xf32>
    %21 = vector.extract_strided_slice %4 {offsets = [2, 0], sizes = [1, 24], strides = [1, 1]} : vector<3x24xf32> to vector<1x24xf32>
    %22 = vector.broadcast %21 : vector<1x24xf32> to vector<256x24xf32>
    %23 = arith.mulf %20, %22 : vector<256x24xf32>
    %24 = arith.addf %19, %23 : vector<256x24xf32>
    %25 = arith.addf %24, %3 : vector<256x24xf32>
    %cst_13 = arith.constant 0.000000e+00 : f32
    %26 = vector.broadcast %cst_13 : f32 to vector<256x24xf32>
    %27 = arith.maximumf %25, %26 : vector<256x24xf32>
    %28 = arith.truncf %27 : vector<256x24xf32> to vector<256x24xbf16>
    %cst_14 = arith.constant dense<0.000000e+00> : vector<256x256xf32>
    %29 = tpu.matmul %28, %2, %cst_14 {dimension_numbers = #tpu.dot_dimension_numbers<[1], [0], [0], [1], [0, 0, 1, 1], [], []>} : vector<256x24xbf16>, vector<24x256xbf16>, vector<256x256xf32> -> vector<256x256xf32>
    %cst_15 = arith.constant 5.000000e-01 : f32
    %30 = vector.broadcast %cst_15 : f32 to vector<256x256xf32>
    %31 = arith.mulf %30, %29 : vector<256x256xf32>
    %32 = math.tanh %31 : vector<256x256xf32>
    %cst_16 = arith.constant 1.000000e+00 : f32
    %33 = vector.broadcast %cst_16 : f32 to vector<256x256xf32>
    %34 = arith.addf %32, %33 : vector<256x256xf32>
    %cst_17 = arith.constant 5.000000e-01 : f32
    %35 = vector.broadcast %cst_17 : f32 to vector<256x256xf32>
    %36 = arith.mulf %35, %34 : vector<256x256xf32>
    %37 = arith.mulf %6, %36 : vector<256x256xf32>
    %c0_18 = arith.constant 0 : index
    %c0_19 = arith.constant 0 : index
    %c0_20 = arith.constant 0 : index
    %38 = vector.load %arg7[%c0_18, %c0_19, %c0_20] : memref<1x256x256xf32, #tpu.memory_space<vmem>>, vector<1x256x256xf32>
    %39 = vector.shape_cast %38 : vector<1x256x256xf32> to vector<256x256xf32>
    %40 = vector.shape_cast %37 : vector<256x256xf32> to vector<1x256x256xf32>
    tpu.vector_store %arg7[%c0_18, %c0_19, %c0_20], %40 {strides = array<i32>} : memref<1x256x256xf32, #tpu.memory_space<vmem>>, vector<1x256x256xf32>,
    return
  }
  func.func @transform_0(%arg0: i32) -> (i32, i32, i32) {
    %c0_i32 = arith.constant 0 : i32
    %c0_i32_0 = arith.constant 0 : i32
    %c0_i32_1 = arith.constant 0 : i32
    return %arg0, %c0_i32, %c0_i32_0 : i32, i32, i32
  }
  func.func @transform_1(%arg0: i32) -> (i32, i32) {
    %c0_i32 = arith.constant 0 : i32
    %c0_i32_0 = arith.constant 0 : i32
    %c0_i32_1 = arith.constant 0 : i32
    return %c0_i32, %c0_i32_0 : i32, i32
  }
  func.func @transform_2(%arg0: i32) -> (i32, i32) {
    %c0_i32 = arith.constant 0 : i32
    %c0_i32_0 = arith.constant 0 : i32
    %c0_i32_1 = arith.constant 0 : i32
    return %c0_i32, %c0_i32_0 : i32, i32
  }
  func.func @transform_3(%arg0: i32) -> (i32, i32) {
    %c0_i32 = arith.constant 0 : i32
    %c0_i32_0 = arith.constant 0 : i32
    %c0_i32_1 = arith.constant 0 : i32
    return %c0_i32, %c0_i32_0 : i32, i32
  }
  func.func @transform_4(%arg0: i32) -> (i32, i32) {
    %c0_i32 = arith.constant 0 : i32
    %c0_i32_0 = arith.constant 0 : i32
    %c0_i32_1 = arith.constant 0 : i32
    return %c0_i32, %c0_i32_0 : i32, i32
  }
  func.func @transform_5(%arg0: i32) -> (i32, i32) {
    %c0_i32 = arith.constant 0 : i32
    %c0_i32_0 = arith.constant 0 : i32
    %c0_i32_1 = arith.constant 0 : i32
    return %c0_i32, %c0_i32_0 : i32, i32
  }
  func.func @transform_6(%arg0: i32) -> (i32, i32, i32) {
    %c0_i32 = arith.constant 0 : i32
    %c0_i32_0 = arith.constant 0 : i32
    %c0_i32_1 = arith.constant 0 : i32
    return %arg0, %c0_i32, %c0_i32_0 : i32, i32, i32
  }
}

</mosaic_0001>

<llo_original>
// kernel: _psa_forward.1
$region0: #{_psa_forward.1}
  #allocation0 [shape = 'u32[]', space=smem, size = 0x4, offset = 0x4, fixed_abs, tag = 'smem constant byte address 0x4 - core index']
  #allocation1 [shape = 'u32[144,128]{1,0:T(1,128)}', space=vmem, size = 0x12000, scoped, tag = 'internal scratch']
  %s0 = inlined_call_operand.vmem [shape: f32[2,256,256], index: 0, kind: input, shape index: {}]
  %s1 = inlined_call_operand.vmem [shape: bf16[256,24], index: 1, kind: input, shape index: {}]
  %s2 = inlined_call_operand.vmem [shape: bf16[768,256], index: 2, kind: input, shape index: {}]
  %s3 = inlined_call_operand.vmem [shape: bf16[24,256], index: 3, kind: input, shape index: {}]
  %s4 = inlined_call_operand.vmem [shape: f32[256,24], index: 4, kind: input, shape index: {}]
  %s5 = inlined_call_operand.vmem [shape: f32[3,24], index: 5, kind: input, shape index: {}]
  %s6 = inlined_call_operand.vmem [shape: f32[2,256,256], index: 6, kind: output, shape index: {}]
  %s7 = sld [smem:[#allocation0]]
  $region57: #{_psa_forward.1} parent=0
    _
  %s9 = ssub.s32 1, %s7
  %s10 = scalar_select 0, %s9, %s7
  loop: start=0, step=1, limit=4
  $region2: #{_psa_forward.1} parent=0 // loop_pre_header
    _
  $region3: #{_psa_forward.1} parent=0 // loop_header
    %s12 = sphi 0, %s16
    %p13 = scmp.ge.s32.totalorder %s12, 4
    %s22 = sphi 0, %s24
    %s25 = sphi 0, %s22
    %s26 = sphi 0, %s25
    %s42 = sphi 0, %s26
    %s46 = sphi 0, %s46
    %s48 = sphi 0, %s46
    %s49 = sphi 0, %s48
    %s63 = sphi 0, %s49
    %s67 = sphi 0, %s67
    %s69 = sphi 0, %s67
    %s70 = sphi 0, %s69
    %s84 = sphi 0, %s70
    %s88 = sphi 0, %s88
    %s90 = sphi 0, %s88
    %s91 = sphi 0, %s90
    %s105 = sphi 0, %s91
    %s109 = sphi 0, %s109
    %s111 = sphi 0, %s109
    %s112 = sphi 0, %s111
    %s126 = sphi 0, %s112
    %s130 = sphi 0, %s130
    %s132 = sphi 0, %s130
    %s133 = sphi 0, %s132
    %s147 = sphi 0, %s133
    %s153 = sphi 0, %s155
    %s156 = sphi 0, %s153
    %s157 = sphi 0, %s156
    %s173 = sphi 0, %s157
  $region4: #{_psa_forward.1} parent=0 // loop_header_branch
    %15 = sbr.rel (%p13) target = $region8
  $region5: #{_psa_forward.1} parent=0 // loop_body
    %s17 = ssub.s32 %s12, 1
    %s18 = ssub.s32 %s12, 2
    %s19 = sadd.s32 %s12, 1
    %s20 = ssub.s32 %s12, %s19
    %p21 = scmp.eq.s32.totalorder %s20, 0
    %s23 = sadd.s32 %s22, 1
    %s24 = scalar_select %p21, %s22, %s23
    %p27 = pneg %p21
    %p28 = scmp.eq.s32.totalorder %s12, 1
    %p29 = por %p27, %p28
    %p30 = scmp.ne.s32.totalorder %s22, %s25
    %p31 = scmp.eq.s32.totalorder %s12, 0
    %p32 = por %p30, %p31
    %p33 = scmp.ne.s32.totalorder %s22, %s25
    %p34 = scmp.eq.s32.totalorder %s17, 1
    %p35 = por %p33, %p34
    %p36 = scmp.ne.s32.totalorder %s25, %s26
    %p37 = scmp.eq.s32.totalorder %s17, 0
    %p38 = por %p36, %p37
    %p39 = scmp.ne.s32.totalorder %s25, %s26
    %p40 = scmp.eq.s32.totalorder %s18, 1
    %p41 = por %p39, %p40
    %p43 = scmp.ne.s32.totalorder %s26, %s42
    %p44 = scmp.eq.s32.totalorder %s18, 0
    %p45 = por %p43, %p44
    %s47 = sadd.s32 %s46, 1
    %p50 = scmp.eq.s32.totalorder %s12, 1
    %p51 = scmp.ne.s32.totalorder %s46, %s48
    %p52 = scmp.eq.s32.totalorder %s12, 0
    %p53 = por %p51, %p52
    %p54 = scmp.ne.s32.totalorder %s46, %s48
    %p55 = scmp.eq.s32.totalorder %s17, 1
    %p56 = por %p54, %p55
    %p57 = scmp.ne.s32.totalorder %s48, %s49
    %p58 = scmp.eq.s32.totalorder %s17, 0
    %p59 = por %p57, %p58
    %p60 = scmp.ne.s32.totalorder %s48, %s49
    %p61 = scmp.eq.s32.totalorder %s18, 1
    %p62 = por %p60, %p61
    %p64 = scmp.ne.s32.totalorder %s49, %s63
    %p65 = scmp.eq.s32.totalorder %s18, 0
    %p66 = por %p64, %p65
    %s68 = sadd.s32 %s67, 1
    %p71 = scmp.eq.s32.totalorder %s12, 1
    %p72 = scmp.ne.s32.totalorder %s67, %s69
    %p73 = scmp.eq.s32.totalorder %s12, 0
    %p74 = por %p72, %p73
    %p75 = scmp.ne.s32.totalorder %s67, %s69
    %p76 = scmp.eq.s32.totalorder %s17, 1
    %p77 = por %p75, %p76
    %p78 = scmp.ne.s32.totalorder %s69, %s70
    %p79 = scmp.eq.s32.totalorder %s17, 0
    %p80 = por %p78, %p79
    %p81 = scmp.ne.s32.totalorder %s69, %s70
    %p82 = scmp.eq.s32.totalorder %s18, 1
    %p83 = por %p81, %p82
    %p85 = scmp.ne.s32.totalorder %s70, %s84
    %p86 = scmp.eq.s32.totalorder %s18, 0
    %p87 = por %p85, %p86
    %s89 = sadd.s32 %s88, 1
    %p92 = scmp.eq.s32.totalorder %s12, 1
    %p93 = scmp.ne.s32.totalorder %s88, %s90
    %p94 = scmp.eq.s32.totalorder %s12, 0
    %p95 = por %p93, %p94
    %p96 = scmp.ne.s32.totalorder %s88, %s90
    %p97 = scmp.eq.s32.totalorder %s17, 1
    %p98 = por %p96, %p97
    %p99 = scmp.ne.s32.totalorder %s90, %s91
    %p100 = scmp.eq.s32.totalorder %s17, 0
    %p101 = por %p99, %p100
    %p102 = scmp.ne.s32.totalorder %s90, %s91
    %p103 = scmp.eq.s32.totalorder %s18, 1
    %p104 = por %p102, %p103
    %p106 = scmp.ne.s32.totalorder %s91, %s105
    %p107 = scmp.eq.s32.totalorder %s18, 0
    %p108 = por %p106, %p107
    %s110 = sadd.s32 %s109, 1
    %p113 = scmp.eq.s32.totalorder %s12, 1
    %p114 = scmp.ne.s32.totalorder %s109, %s111
    %p115 = scmp.eq.s32.totalorder %s12, 0
    %p116 = por %p114, %p115
    %p117 = scmp.ne.s32.totalorder %s109, %s111
    %p118 = scmp.eq.s32.totalorder %s17, 1
    %p119 = por %p117, %p118
    %p120 = scmp.ne.s32.totalorder %s111, %s112
    %p121 = scmp.eq.s32.totalorder %s17, 0
    %p122 = por %p120, %p121
    %p123 = scmp.ne.s32.totalorder %s111, %s112
    %p124 = scmp.eq.s32.totalorder %s18, 1
    %p125 = por %p123, %p124
    %p127 = scmp.ne.s32.totalorder %s112, %s126
    %p128 = scmp.eq.s32.totalorder %s18, 0
    %p129 = por %p127, %p128
    %s131 = sadd.s32 %s130, 1
    %p134 = scmp.eq.s32.totalorder %s12, 1
    %p135 = scmp.ne.s32.totalorder %s130, %s132
    %p136 = scmp.eq.s32.totalorder %s12, 0
    %p137 = por %p135, %p136
    %p138 = scmp.ne.s32.totalorder %s130, %s132
    %p139 = scmp.eq.s32.totalorder %s17, 1
    %p140 = por %p138, %p139
    %p141 = scmp.ne.s32.totalorder %s132, %s133
    %p142 = scmp.eq.s32.totalorder %s17, 0
    %p143 = por %p141, %p142
    %p144 = scmp.ne.s32.totalorder %s132, %s133
    %p145 = scmp.eq.s32.totalorder %s18, 1
    %p146 = por %p144, %p145
    %p148 = scmp.ne.s32.totalorder %s133, %s147
    %p149 = scmp.eq.s32.totalorder %s18, 0
    %p150 = por %p148, %p149
    %s151 = ssub.s32 %s12, %s19
    %p152 = scmp.eq.s32.totalorder %s151, 0
    %s154 = sadd.s32 %s153, 1
    %s155 = scalar_select %p152, %s153, %s154
    %p158 = pneg %p152
    %p159 = scmp.eq.s32.totalorder %s12, 1
    %p160 = por %p158, %p159
    %p161 = scmp.ne.s32.totalorder %s153, %s156
    %p162 = scmp.eq.s32.totalorder %s12, 0
    %p163 = por %p161, %p162
    %p164 = scmp.ne.s32.totalorder %s153, %s156
    %p165 = scmp.eq.s32.totalorder %s17, 1
    %p166 = por %p164, %p165
    %p167 = scmp.ne.s32.totalorder %s156, %s157
    %p168 = scmp.eq.s32.totalorder %s17, 0
    %p169 = por %p167, %p168
    %p170 = scmp.ne.s32.totalorder %s156, %s157
    %p171 = scmp.eq.s32.totalorder %s18, 1
    %p172 = por %p170, %p171
    %p174 = scmp.ne.s32.totalorder %s157, %s173
    %p175 = scmp.eq.s32.totalorder %s18, 0
    %p176 = por %p174, %p175
    %p177 = scmp.le.s32.totalorder 1, %s12
    %p178 = scmp.lt.s32.totalorder %s12, 3
    %p179 = pnand %p177, %p178
    %p180 = pneg %p179
    // Predicated region
    $region9: #{_psa_forward.1} parent=5 // pred_check
      _
    $region10: #{_psa_forward.1} parent=5 // pred_check_branch
      %182 = sbr.rel (%p179) target = $region12
    $region11: #{_psa_forward.1} parent=5 // pred_region
      %s183 = ssub.s32 %s12, 1
      // Predicated region
      $region13: #{_psa_forward.1} parent=11 // pred_check
        %p184 = pneg %p59
      $region14: #{_psa_forward.1} parent=11 // pred_check_branch
        %186 = sbr.rel (%p184) target = $region16
      $region15: #{_psa_forward.1} parent=11 // pred_region
        _
      $region16: #{_psa_forward.1} parent=11 // pred_fallthru
        _
      // Predicated region
      $region17: #{_psa_forward.1} parent=11 // pred_check
        %p187 = pneg %p80
      $region18: #{_psa_forward.1} parent=11 // pred_check_branch
        %189 = sbr.rel (%p187) target = $region20
      $region19: #{_psa_forward.1} parent=11 // pred_region
        _
      $region20: #{_psa_forward.1} parent=11 // pred_fallthru
        _
      // Predicated region
      $region21: #{_psa_forward.1} parent=11 // pred_check
        %p190 = pneg %p101
      $region22: #{_psa_forward.1} parent=11 // pred_check_branch
        %192 = sbr.rel (%p190) target = $region24
      $region23: #{_psa_forward.1} parent=11 // pred_region
        _
      $region24: #{_psa_forward.1} parent=11 // pred_fallthru
        _
      // Predicated region
      $region25: #{_psa_forward.1} parent=11 // pred_check
        %p193 = pneg %p122
      $region26: #{_psa_forward.1} parent=11 // pred_check_branch
        %195 = sbr.rel (%p193) target = $region28
      $region27: #{_psa_forward.1} parent=11 // pred_region
        _
      $region28: #{_psa_forward.1} parent=11 // pred_fallthru
        _
      // Predicated region
      $region29: #{_psa_forward.1} parent=11 // pred_check
        %p196 = pneg %p143
      $region30: #{_psa_forward.1} parent=11 // pred_check_branch
        %198 = sbr.rel (%p196) target = $region32
      $region31: #{_psa_forward.1} parent=11 // pred_region
        _
      $region32: #{_psa_forward.1} parent=11 // pred_fallthru
        _
    $region12: #{_psa_forward.1} parent=5 // pred_fallthru
      _
    %p199 = scmp.lt.s32.totalorder %s12, 2
    // Predicated region
    $region33: #{_psa_forward.1} parent=5 // pred_check
      %p200 = pneg %p199
    $region34: #{_psa_forward.1} parent=5 // pred_check_branch
      %202 = sbr.rel (%p200) target = $region36
    $region35: #{_psa_forward.1} parent=5 // pred_region
      // Predicated region
      $region37: #{_psa_forward.1} parent=35 // pred_check
        %p203 = pneg %p32
      $region38: #{_psa_forward.1} parent=35 // pred_check_branch
        %205 = sbr.rel (%p203) target = $region40
      $region39: #{_psa_forward.1} parent=35 // pred_region
        %p206 = scmp.lt.s32.totalorder %s12, 1
        %s207 = scalar_select %p206, %s12, 1
        %s208 = smul.addr %s207, 64
        %s209 = smul.addr %s208, 8
        %s210 = scalar_lea.vmem %s0, %s209
      $region40: #{_psa_forward.1} parent=35 // pred_fallthru
        _
    $region36: #{_psa_forward.1} parent=5 // pred_fallthru
      _
    %p211 = scmp.le.s32.totalorder 1, %s12
    %p212 = scmp.lt.s32.totalorder %s12, 3
    %p213 = pnand %p211, %p212
    %p214 = pneg %p213
    // Predicated region
    $region41: #{_psa_forward.1} parent=5 // pred_check
      _
    $region42: #{_psa_forward.1} parent=5 // pred_check_branch
      %216 = sbr.rel (%p213) target = $region44
    $region43: #{_psa_forward.1} parent=5 // pred_region
      %s217 = ssub.s32 %s12, 1
      %p218 = scmp.lt.s32.totalorder %s17, 1
      %s219 = scalar_select %p218, %s17, 1
      %s220 = smul.addr %s219, 64
      %s221 = smul.addr %s220, 8
      %s222 = scalar_lea.vmem %s0, %s221
      %p223 = pneg %p38
      %p224 = pneg %p35
      %p225 = pneg %p59
      %p226 = pneg %p56
      %p227 = pneg %p80
      %p228 = pneg %p77
      %p229 = pneg %p101
      %p230 = pneg %p98
      %p231 = pneg %p122
      %p232 = pneg %p119
      %p233 = pneg %p143
      %p234 = pneg %p140
      %p235 = pneg %p169
      %p236 = pneg %p166
      %p237 = scmp.lt.s32.totalorder %s17, 1
      %s238 = scalar_select %p237, %s17, 1
      %s239 = smul.addr %s238, 64
      %s240 = smul.addr %s239, 8
      %s241 = scalar_lea.vmem %s6, %s240
      %p242 = scmp.lt.s32.totalorder %s17, 1
      %s243 = scalar_select %p242, %s17, 1
      %s244 = smul.addr %s243, 64
      %s245 = smul.addr %s244, 8
      %s246 = scalar_lea.vmem %s0, %s245
      %p247 = scmp.lt.s32.totalorder %s17, 1
      %s248 = scalar_select %p247, %s17, 1
      %s249 = smul.addr %s248, 64
      %s250 = smul.addr %s249, 8
      %s251 = scalar_lea.vmem %s6, %s250
      %v253 = vld [vmem:[%s1] sm:$0xf]
      %v254 = vld [vmem:[%s1 + $0x4] sm:$0xf]
      %v255 = vld [vmem:[%s1 + $0x8] sm:$0xf]
      %v256 = vld [vmem:[%s1 + $0xc] sm:$0xf]
      %v257 = vld [vmem:[%s1 + $0x10] sm:$0xf]
      %v258 = vld [vmem:[%s1 + $0x14] sm:$0xf]
      %v259 = vld [vmem:[%s1 + $0x18] sm:$0xf]
      %v260 = vld [vmem:[%s1 + $0x1c] sm:$0xf]
      %v261 = vld [vmem:[%s1 + $0x20] sm:$0xf]
      %v262 = vld [vmem:[%s1 + $0x24] sm:$0xf]
      %v263 = vld [vmem:[%s1 + $0x28] sm:$0xf]
      %v264 = vld [vmem:[%s1 + $0x2c] sm:$0xf]
      %v265 = vld [vmem:[%s1 + $0x30] sm:$0xf]
      %v266 = vld [vmem:[%s1 + $0x34] sm:$0xf]
      %v267 = vld [vmem:[%s1 + $0x38] sm:$0xf]
      %v268 = vld [vmem:[%s1 + $0x3c] sm:$0xf]
      %v269 = vld [vmem:[%s1 + $0x40] sm:$0xf]
      %v270 = vld [vmem:[%s1 + $0x44] sm:$0xf]
      %v271 = vld [vmem:[%s1 + $0x48] sm:$0xf]
      %v272 = vld [vmem:[%s1 + $0x4c] sm:$0xf]
      %v273 = vld [vmem:[%s1 + $0x50] sm:$0xf]
      %v274 = vld [vmem:[%s1 + $0x54] sm:$0xf]
      %v275 = vld [vmem:[%s1 + $0x58] sm:$0xf]
      %v276 = vld [vmem:[%s1 + $0x5c] sm:$0xf]
      %v277 = vld [vmem:[%s1 + $0x60] sm:$0xf]
      %v278 = vld [vmem:[%s1 + $0x64] sm:$0xf]
      %v279 = vld [vmem:[%s1 + $0x68] sm:$0xf]
      %v280 = vld [vmem:[%s1 + $0x6c] sm:$0xf]
      %v281 = vld [vmem:[%s1 + $0x70] sm:$0xf]
      %v282 = vld [vmem:[%s1 + $0x74] sm:$0xf]
      %v283 = vld [vmem:[%s1 + $0x78] sm:$0xf]
      %v284 = vld [vmem:[%s1 + $0x7c] sm:$0xf]
      %v285 = vld [vmem:[%s2] sm:$0xff]
      %v286 = vld [vmem:[%s2 + $0x8] sm:$0xff]
      %v287 = vld [vmem:[%s2 + $0x10] sm:$0xff]
      %v288 = vld [vmem:[%s2 + $0x18] sm:$0xff]
      %v289 = vld [vmem:[%s2 + $0x20] sm:$0xff]
      %v290 = vld [vmem:[%s2 + $0x28] sm:$0xff]
      %v291 = vld [vmem:[%s2 + $0x30] sm:$0xff]
      %v292 = vld [vmem:[%s2 + $0x38] sm:$0xff]
      %v293 = vld [vmem:[%s2 + $0x40] sm:$0xff]
      %v294 = vld [vmem:[%s2 + $0x48] sm:$0xff]
      %v295 = vld [vmem:[%s2 + $0x50] sm:$0xff]
      %v296 = vld [vmem:[%s2 + $0x58] sm:$0xff]
      %v297 = vld [vmem:[%s2 + $0x60] sm:$0xff]
      %v298 = vld [vmem:[%s2 + $0x68] sm:$0xff]
      %v299 = vld [vmem:[%s2 + $0x70] sm:$0xff]
      %v300 = vld [vmem:[%s2 + $0x78] sm:$0xff]
      %v301 = vld [vmem:[%s2 + $0x80] sm:$0xff]
      %v302 = vld [vmem:[%s2 + $0x88] sm:$0xff]
      %v303 = vld [vmem:[%s2 + $0x90] sm:$0xff]
      %v304 = vld [vmem:[%s2 + $0x98] sm:$0xff]
      %v305 = vld [vmem:[%s2 + $0xa0] sm:$0xff]
      %v306 = vld [vmem:[%s2 + $0xa8] sm:$0xff]
      %v307 = vld [vmem:[%s2 + $0xb0] sm:$0xff]
      %v308 = vld [vmem:[%s2 + $0xb8] sm:$0xff]
      %v309 = vld [vmem:[%s2 + $0xc0] sm:$0xff]
      %v310 = vld [vmem:[%s2 + $0xc8] sm:$0xff]
      %v311 = vld [vmem:[%s2 + $0xd0] sm:$0xff]
      %v312 = vld [vmem:[%s2 + $0xd8] sm:$0xff]
      %v313 = vld [vmem:[%s2 + $0xe0] sm:$0xff]
      %v314 = vld [vmem:[%s2 + $0xe8] sm:$0xff]
      %v315 = vld [vmem:[%s2 + $0xf0] sm:$0xff]
      %v316 = vld [vmem:[%s2 + $0xf8] sm:$0xff]
      %v317 = vld [vmem:[%s2 + $0x100] sm:$0xff]
      %v318 = vld [vmem:[%s2 + $0x108] sm:$0xff]
      %v319 = vld [vmem:[%s2 + $0x110] sm:$0xff]
      %v320 = vld [vmem:[%s2 + $0x118] sm:$0xff]
      %v321 = vld [vmem:[%s2 + $0x120] sm:$0xff]
      %v322 = vld [vmem:[%s2 + $0x128] sm:$0xff]
      %v323 = vld [vmem:[%s2 + $0x130] sm:$0xff]
      %v324 = vld [vmem:[%s2 + $0x138] sm:$0xff]
      %v325 = vld [vmem:[%s2 + $0x140] sm:$0xff]
      %v326 = vld [vmem:[%s2 + $0x148] sm:$0xff]
      %v327 = vld [vmem:[%s2 + $0x150] sm:$0xff]
      %v328 = vld [vmem:[%s2 + $0x158] sm:$0xff]
      %v329 = vld [vmem:[%s2 + $0x160] sm:$0xff]
      %v330 = vld [vmem:[%s2 + $0x168] sm:$0xff]
      %v331 = vld [vmem:[%s2 + $0x170] sm:$0xff]
      %v332 = vld [vmem:[%s2 + $0x178] sm:$0xff]
      %v333 = vld [vmem:[%s2 + $0x180] sm:$0xff]
      %v334 = vld [vmem:[%s2 + $0x188] sm:$0xff]
      %v335 = vld [vmem:[%s2 + $0x190] sm:$0xff]
      %v336 = vld [vmem:[%s2 + $0x198] sm:$0xff]
      %v337 = vld [vmem:[%s2 + $0x1a0] sm:$0xff]
      %v338 = vld [vmem:[%s2 + $0x1a8] sm:$0xff]
      %v339 = vld [vmem:[%s2 + $0x1b0] sm:$0xff]
      %v340 = vld [vmem:[%s2 + $0x1b8] sm:$0xff]
      %v341 = vld [vmem:[%s2 + $0x1c0] sm:$0xff]
      %v342 = vld [vmem:[%s2 + $0x1c8] sm:$0xff]
      %v343 = vld [vmem:[%s2 + $0x1d0] sm:$0xff]
      %v344 = vld [vmem:[%s2 + $0x1d8] sm:$0xff]
      %v345 = vld [vmem:[%s2 + $0x1e0] sm:$0xff]
      %v346 = vld [vmem:[%s2 + $0x1e8] sm:$0xff]
      %v347 = vld [vmem:[%s2 + $0x1f0] sm:$0xff]
      %v348 = vld [vmem:[%s2 + $0x1f8] sm:$0xff]
      %v349 = vld [vmem:[%s2 + $0x200] sm:$0xff]
      %v350 = vld [vmem:[%s2 + $0x208] sm:$0xff]
      %v351 = vld [vmem:[%s2 + $0x210] sm:$0xff]
      %v352 = vld [vmem:[%s2 + $0x218] sm:$0xff]
      %v353 = vld [vmem:[%s2 + $0x220] sm:$0xff]
      %v354 = vld [vmem:[%s2 + $0x228] sm:$0xff]
      %v355 = vld [vmem:[%s2 + $0x230] sm:$0xff]
      %v356 = vld [vmem:[%s2 + $0x238] sm:$0xff]
      %v357 = vld [vmem:[%s2 + $0x240] sm:$0xff]
      %v358 = vld [vmem:[%s2 + $0x248] sm:$0xff]
      %v359 = vld [vmem:[%s2 + $0x250] sm:$0xff]
      %v360 = vld [vmem:[%s2 + $0x258] sm:$0xff]
      %v361 = vld [vmem:[%s2 + $0x260] sm:$0xff]
      %v362 = vld [vmem:[%s2 + $0x268] sm:$0xff]
      %v363 = vld [vmem:[%s2 + $0x270] sm:$0xff]
      %v364 = vld [vmem:[%s2 + $0x278] sm:$0xff]
      %v365 = vld [vmem:[%s2 + $0x280] sm:$0xff]
      %v366 = vld [vmem:[%s2 + $0x288] sm:$0xff]
      %v367 = vld [vmem:[%s2 + $0x290] sm:$0xff]
      %v368 = vld [vmem:[%s2 + $0x298] sm:$0xff]
      %v369 = vld [vmem:[%s2 + $0x2a0] sm:$0xff]
      %v370 = vld [vmem:[%s2 + $0x2a8] sm:$0xff]
      %v371 = vld [vmem:[%s2 + $0x2b0] sm:$0xff]
      %v372 = vld [vmem:[%s2 + $0x2b8] sm:$0xff]
      %v373 = vld [vmem:[%s2 + $0x2c0] sm:$0xff]
      %v374 = vld [vmem:[%s2 + $0x2c8] sm:$0xff]
      %v375 = vld [vmem:[%s2 + $0x2d0] sm:$0xff]
      %v376 = vld [vmem:[%s2 + $0x2d8] sm:$0xff]
      %v377 = vld [vmem:[%s2 + $0x2e0] sm:$0xff]
      %v378 = vld [vmem:[%s2 + $0x2e8] sm:$0xff]
      %v379 = vld [vmem:[%s2 + $0x2f0] sm:$0xff]
      %v380 = vld [vmem:[%s2 + $0x2f8] sm:$0xff]
      %v381 = vld [vmem:[%s3] sm:$0xff]
      %v382 = vld [vmem:[%s3 + $0x8] sm:$0xff]
      %v383 = vld [vmem:[%s3 + $0x10] sm:$0xff]
      %v384 = vld [vmem:[%s4] sm:$0xff]
      %v385 = vld [vmem:[%s4 + $0x8] sm:$0xff]
      %v386 = vld [vmem:[%s4 + $0x10] sm:$0xff]
      %v387 = vld [vmem:[%s4 + $0x18] sm:$0xff]
      %v388 = vld [vmem:[%s4 + $0x20] sm:$0xff]
      %v389 = vld [vmem:[%s4 + $0x28] sm:$0xff]
      %v390 = vld [vmem:[%s4 + $0x30] sm:$0xff]
      %v391 = vld [vmem:[%s4 + $0x38] sm:$0xff]
      %v392 = vld [vmem:[%s4 + $0x40] sm:$0xff]
      %v393 = vld [vmem:[%s4 + $0x48] sm:$0xff]
      %v394 = vld [vmem:[%s4 + $0x50] sm:$0xff]
      %v395 = vld [vmem:[%s4 + $0x58] sm:$0xff]
      %v396 = vld [vmem:[%s4 + $0x60] sm:$0xff]
      %v397 = vld [vmem:[%s4 + $0x68] sm:$0xff]
      %v398 = vld [vmem:[%s4 + $0x70] sm:$0xff]
      %v399 = vld [vmem:[%s4 + $0x78] sm:$0xff]
      %v400 = vld [vmem:[%s4 + $0x80] sm:$0xff]
      %v401 = vld [vmem:[%s4 + $0x88] sm:$0xff]
      %v402 = vld [vmem:[%s4 + $0x90] sm:$0xff]
      %v403 = vld [vmem:[%s4 + $0x98] sm:$0xff]
      %v404 = vld [vmem:[%s4 + $0xa0] sm:$0xff]
      %v405 = vld [vmem:[%s4 + $0xa8] sm:$0xff]
      %v406 = vld [vmem:[%s4 + $0xb0] sm:$0xff]
      %v407 = vld [vmem:[%s4 + $0xb8] sm:$0xff]
      %v408 = vld [vmem:[%s4 + $0xc0] sm:$0xff]
      %v409 = vld [vmem:[%s4 + $0xc8] sm:$0xff]
      %v410 = vld [vmem:[%s4 + $0xd0] sm:$0xff]
      %v411 = vld [vmem:[%s4 + $0xd8] sm:$0xff]
      %v412 = vld [vmem:[%s4 + $0xe0] sm:$0xff]
      %v413 = vld [vmem:[%s4 + $0xe8] sm:$0xff]
      %v414 = vld [vmem:[%s4 + $0xf0] sm:$0xff]
      %v415 = vld [vmem:[%s4 + $0xf8] sm:$0xff]
      %v416 = vld [vmem:[%s5] sm:$0x7]
      %v417 = vld [vmem:[%s246] sm:$0xff]
      %v418 = vld [vmem:[%s246 + $0x8] sm:$0xff]
      %v419 = vld [vmem:[%s246 + $0x10] sm:$0xff]
      %v420 = vld [vmem:[%s246 + $0x18] sm:$0xff]
      %v421 = vld [vmem:[%s246 + $0x20] sm:$0xff]
      %v422 = vld [vmem:[%s246 + $0x28] sm:$0xff]
      %v423 = vld [vmem:[%s246 + $0x30] sm:$0xff]
      %v424 = vld [vmem:[%s246 + $0x38] sm:$0xff]
      %v425 = vld [vmem:[%s246 + $0x40] sm:$0xff]
      %v426 = vld [vmem:[%s246 + $0x48] sm:$0xff]
      %v427 = vld [vmem:[%s246 + $0x50] sm:$0xff]
      %v428 = vld [vmem:[%s246 + $0x58] sm:$0xff]
      %v429 = vld [vmem:[%s246 + $0x60] sm:$0xff]
      %v430 = vld [vmem:[%s246 + $0x68] sm:$0xff]
      %v431 = vld [vmem:[%s246 + $0x70] sm:$0xff]
      %v432 = vld [vmem:[%s246 + $0x78] sm:$0xff]
      %v433 = vld [vmem:[%s246 + $0x80] sm:$0xff]
      %v434 = vld [vmem:[%s246 + $0x88] sm:$0xff]
      %v435 = vld [vmem:[%s246 + $0x90] sm:$0xff]
      %v436 = vld [vmem:[%s246 + $0x98] sm:$0xff]
      %v437 = vld [vmem:[%s246 + $0xa0] sm:$0xff]
      %v438 = vld [vmem:[%s246 + $0xa8] sm:$0xff]
      %v439 = vld [vmem:[%s246 + $0xb0] sm:$0xff]
      %v440 = vld [vmem:[%s246 + $0xb8] sm:$0xff]
      %v441 = vld [vmem:[%s246 + $0xc0] sm:$0xff]
      %v442 = vld [vmem:[%s246 + $0xc8] sm:$0xff]
      %v443 = vld [vmem:[%s246 + $0xd0] sm:$0xff]
      %v444 = vld [vmem:[%s246 + $0xd8] sm:$0xff]
      %v445 = vld [vmem:[%s246 + $0xe0] sm:$0xff]
      %v446 = vld [vmem:[%s246 + $0xe8] sm:$0xff]
      %v447 = vld [vmem:[%s246 + $0xf0] sm:$0xff]
      %v448 = vld [vmem:[%s246 + $0xf8] sm:$0xff]
      %v449 = vld [vmem:[%s246 + $0x100] sm:$0xff]
      %v450 = vld [vmem:[%s246 + $0x108] sm:$0xff]
      %v451 = vld [vmem:[%s246 + $0x110] sm:$0xff]
      %v452 = vld [vmem:[%s246 + $0x118] sm:$0xff]
      %v453 = vld [vmem:[%s246 + $0x120] sm:$0xff]
      %v454 = vld [vmem:[%s246 + $0x128] sm:$0xff]
      %v455 = vld [vmem:[%s246 + $0x130] sm:$0xff]
      %v456 = vld [vmem:[%s246 + $0x138] sm:$0xff]
      %v457 = vld [vmem:[%s246 + $0x140] sm:$0xff]
      %v458 = vld [vmem:[%s246 + $0x148] sm:$0xff]
      %v459 = vld [vmem:[%s246 + $0x150] sm:$0xff]
      %v460 = vld [vmem:[%s246 + $0x158] sm:$0xff]
      %v461 = vld [vmem:[%s246 + $0x160] sm:$0xff]
      %v462 = vld [vmem:[%s246 + $0x168] sm:$0xff]
      %v463 = vld [vmem:[%s246 + $0x170] sm:$0xff]
      %v464 = vld [vmem:[%s246 + $0x178] sm:$0xff]
      %v465 = vld [vmem:[%s246 + $0x180] sm:$0xff]
      %v466 = vld [vmem:[%s246 + $0x188] sm:$0xff]
      %v467 = vld [vmem:[%s246 + $0x190] sm:$0xff]
      %v468 = vld [vmem:[%s246 + $0x198] sm:$0xff]
      %v469 = vld [vmem:[%s246 + $0x1a0] sm:$0xff]
      %v470 = vld [vmem:[%s246 + $0x1a8] sm:$0xff]
      %v471 = vld [vmem:[%s246 + $0x1b0] sm:$0xff]
      %v472 = vld [vmem:[%s246 + $0x1b8] sm:$0xff]
      %v473 = vld [vmem:[%s246 + $0x1c0] sm:$0xff]
      %v474 = vld [vmem:[%s246 + $0x1c8] sm:$0xff]
      %v475 = vld [vmem:[%s246 + $0x1d0] sm:$0xff]
      %v476 = vld [vmem:[%s246 + $0x1d8] sm:$0xff]
      %v477 = vld [vmem:[%s246 + $0x1e0] sm:$0xff]
      %v478 = vld [vmem:[%s246 + $0x1e8] sm:$0xff]
      %v479 = vld [vmem:[%s246 + $0x1f0] sm:$0xff]
      %v480 = vld [vmem:[%s246 + $0x1f8] sm:$0xff]
      %v481 = vpack.c.bf16 %v419, %v417
      %v482 = vpack.c.bf16 %v420, %v418
      %v483 = vpack.c.bf16 %v423, %v421
      %v484 = vpack.c.bf16 %v424, %v422
      %v485 = vpack.c.bf16 %v427, %v425
      %v486 = vpack.c.bf16 %v428, %v426
      %v487 = vpack.c.bf16 %v431, %v429
      %v488 = vpack.c.bf16 %v432, %v430
      %v489 = vpack.c.bf16 %v435, %v433
      %v490 = vpack.c.bf16 %v436, %v434
      %v491 = vpack.c.bf16 %v439, %v437
      %v492 = vpack.c.bf16 %v440, %v438
      %v493 = vpack.c.bf16 %v443, %v441
      %v494 = vpack.c.bf16 %v444, %v442
      %v495 = vpack.c.bf16 %v447, %v445
      %v496 = vpack.c.bf16 %v448, %v446
      %v497 = vpack.c.bf16 %v451, %v449
      %v498 = vpack.c.bf16 %v452, %v450
      %v499 = vpack.c.bf16 %v455, %v453
      %v500 = vpack.c.bf16 %v456, %v454
      %v501 = vpack.c.bf16 %v459, %v457
      %v502 = vpack.c.bf16 %v460, %v458
      %v503 = vpack.c.bf16 %v463, %v461
      %v504 = vpack.c.bf16 %v464, %v462
      %v505 = vpack.c.bf16 %v467, %v465
      %v506 = vpack.c.bf16 %v468, %v466
      %v507 = vpack.c.bf16 %v471, %v469
      %v508 = vpack.c.bf16 %v472, %v470
      %v509 = vpack.c.bf16 %v475, %v473
      %v510 = vpack.c.bf16 %v476, %v474
      %v511 = vpack.c.bf16 %v479, %v477
      %v512 = vpack.c.bf16 %v480, %v478
      %v545 = vunpack.c.l.b16 %v253
      %v546 = vunpack.c.l.b16 %v254
      %v547 = vunpack.c.l.b16 %v255
      %v548 = vunpack.c.l.b16 %v256
      %v549 = vunpack.c.l.b16 %v257
      %v550 = vunpack.c.l.b16 %v258
      %v551 = vunpack.c.l.b16 %v259
      %v552 = vunpack.c.l.b16 %v260
      %v553 = vunpack.c.l.b16 %v261
      %v554 = vunpack.c.l.b16 %v262
      %v555 = vunpack.c.l.b16 %v263
      %v556 = vunpack.c.l.b16 %v264
      %v557 = vunpack.c.l.b16 %v265
      %v558 = vunpack.c.l.b16 %v266
      %v559 = vunpack.c.l.b16 %v267
      %v560 = vunpack.c.l.b16 %v268
      %v561 = vunpack.c.l.b16 %v269
      %v562 = vunpack.c.l.b16 %v270
      %v563 = vunpack.c.l.b16 %v271
      %v564 = vunpack.c.l.b16 %v272
      %v565 = vunpack.c.l.b16 %v273
      %v566 = vunpack.c.l.b16 %v274
      %v567 = vunpack.c.l.b16 %v275
      %v568 = vunpack.c.l.b16 %v276
      %v569 = vunpack.c.l.b16 %v277
      %v570 = vunpack.c.l.b16 %v278
      %v571 = vunpack.c.l.b16 %v279
      %v572 = vunpack.c.l.b16 %v280
      %v573 = vunpack.c.l.b16 %v281
      %v574 = vunpack.c.l.b16 %v282
      %v575 = vunpack.c.l.b16 %v283
      %v576 = vunpack.c.l.b16 %v284
      %v577 = vpack.c.b16 %v546, %v545
      %v578 = vpack.c.b16 %v548, %v547
      %v579 = vpack.c.b16 %v550, %v549
      %v580 = vpack.c.b16 %v552, %v551
      %v581 = vpack.c.b16 %v554, %v553
      %v582 = vpack.c.b16 %v556, %v555
      %v583 = vpack.c.b16 %v558, %v557
      %v584 = vpack.c.b16 %v560, %v559
      %v585 = vpack.c.b16 %v562, %v561
      %v586 = vpack.c.b16 %v564, %v563
      %v587 = vpack.c.b16 %v566, %v565
      %v588 = vpack.c.b16 %v568, %v567
      %v589 = vpack.c.b16 %v570, %v569
      %v590 = vpack.c.b16 %v572, %v571
      %v591 = vpack.c.b16 %v574, %v573
      %v592 = vpack.c.b16 %v576, %v575
      %609 = vmatprep.subr.bf16.mxu0 0
      %610 = vmatpush1.bf16.msra.mxu0 %v584
      %611 = vmatprep.subr.bf16.mxu0 0
      %612 = vmatpush1.bf16.msra.mxu0 %v583
      %613 = vmatprep.subr.bf16.mxu0 0
      %614 = vmatpush1.bf16.msra.mxu0 %v582
      %615 = vmatprep.subr.bf16.mxu0 0
      %616 = vmatpush1.bf16.msra.mxu0 %v581
      %617 = vmatprep.subr.bf16.mxu0 0
      %618 = vmatpush1.bf16.msra.mxu0 %v580
      %619 = vmatprep.subr.bf16.mxu0 0
      %620 = vmatpush1.bf16.msra.mxu0 %v579
      %621 = vmatprep.subr.bf16.mxu0 0
      %622 = vmatpush1.bf16.msra.mxu0 %v578
      %623 = vmatprep.subr.bf16.mxu0 0
      %624 = vmatpush1.bf16.msra.mxu0 %v577
      %625 = vmatprep.subr.bf16.mxu0 0
      %626 = vmatpush2.bf16.msra.mxu0 %v592
      %627 = vmatprep.subr.bf16.mxu0 0
      %628 = vmatpush2.bf16.msra.mxu0 %v591
      %629 = vmatprep.subr.bf16.mxu0 0
      %630 = vmatpush2.bf16.msra.mxu0 %v590
      %631 = vmatprep.subr.bf16.mxu0 0
      %632 = vmatpush2.bf16.msra.mxu0 %v589
      %633 = vmatprep.subr.bf16.mxu0 0
      %634 = vmatpush2.bf16.msra.mxu0 %v588
      %635 = vmatprep.subr.bf16.mxu0 0
      %636 = vmatpush2.bf16.msra.mxu0 %v587
      %637 = vmatprep.subr.bf16.mxu0 0
      %638 = vmatpush2.bf16.msra.mxu0 %v586
      %639 = vmatprep.subr.bf16.mxu0 0
      %640 = vmatpush2.bf16.msra.mxu0 %v585
      %641 = vmatprep.mubr.bf16.mxu0 %v482
      %642 = vmatmul.mubr.bf16.gmra.mxu0 %v481
      %v643 = vpop.f32.mrf.mxu0
      %v644 = vadd.f32 0.0, %v643
      %v645 = vpop.f32.mrf.mxu0
      %v646 = vpop.f32.mrf.mxu0
      %v647 = vadd.f32 0.0, %v646
      %v648 = vpop.f32.mrf.mxu0
      %649 = vmatprep.mubr.bf16.mxu0 %v484
      %650 = vmatmul.mubr.bf16.gmra.mxu0 %v483
      %v651 = vpop.f32.mrf.mxu0
      %v652 = vadd.f32 0.0, %v651
      %v653 = vpop.f32.mrf.mxu0
      %v654 = vpop.f32.mrf.mxu0
      %v655 = vadd.f32 0.0, %v654
      %v656 = vpop.f32.mrf.mxu0
      %657 = vmatprep.mubr.bf16.mxu0 %v486
      %658 = vmatmul.mubr.bf16.gmra.mxu0 %v485
      %v659 = vpop.f32.mrf.mxu0
      %v660 = vadd.f32 0.0, %v659
      %v661 = vpop.f32.mrf.mxu0
      %v662 = vpop.f32.mrf.mxu0
      %v663 = vadd.f32 0.0, %v662
      %v664 = vpop.f32.mrf.mxu0
      %665 = vmatprep.mubr.bf16.mxu0 %v488
      %666 = vmatmul.mubr.bf16.gmra.mxu0 %v487
      %v667 = vpop.f32.mrf.mxu0
      %v668 = vadd.f32 0.0, %v667
      %v669 = vpop.f32.mrf.mxu0
      %v670 = vpop.f32.mrf.mxu0
      %v671 = vadd.f32 0.0, %v670
      %v672 = vpop.f32.mrf.mxu0
      %673 = vmatprep.mubr.bf16.mxu0 %v490
      %674 = vmatmul.mubr.bf16.gmra.mxu0 %v489
      %v675 = vpop.f32.mrf.mxu0
      %v676 = vadd.f32 0.0, %v675
      %v677 = vpop.f32.mrf.mxu0
      %v678 = vpop.f32.mrf.mxu0
      %v679 = vadd.f32 0.0, %v678
      %v680 = vpop.f32.mrf.mxu0
      %681 = vmatprep.mubr.bf16.mxu0 %v492
      %682 = vmatmul.mubr.bf16.gmra.mxu0 %v491
      %v683 = vpop.f32.mrf.mxu0
      %v684 = vadd.f32 0.0, %v683
      %v685 = vpop.f32.mrf.mxu0
      %v686 = vpop.f32.mrf.mxu0
      %v687 = vadd.f32 0.0, %v686
      %v688 = vpop.f32.mrf.mxu0
      %689 = vmatprep.mubr.bf16.mxu0 %v494
      %690 = vmatmul.mubr.bf16.gmra.mxu0 %v493
      %v691 = vpop.f32.mrf.mxu0
      %v692 = vadd.f32 0.0, %v691
      %v693 = vpop.f32.mrf.mxu0
      %v694 = vpop.f32.mrf.mxu0
      %v695 = vadd.f32 0.0, %v694
      %v696 = vpop.f32.mrf.mxu0
      %697 = vmatprep.mubr.bf16.mxu0 %v496
      %698 = vmatmul.mubr.bf16.gmra.mxu0 %v495
      %v699 = vpop.f32.mrf.mxu0
      %v700 = vadd.f32 0.0, %v699
      %v701 = vpop.f32.mrf.mxu0
      %v702 = vpop.f32.mrf.mxu0
      %v703 = vadd.f32 0.0, %v702
      %v704 = vpop.f32.mrf.mxu0
      %705 = vmatprep.mubr.bf16.mxu0 %v498
      %706 = vmatmul.mubr.bf16.gmra.mxu0 %v497
      %v707 = vpop.f32.mrf.mxu0
      %v708 = vadd.f32 0.0, %v707
      %v709 = vpop.f32.mrf.mxu0
      %v710 = vpop.f32.mrf.mxu0
      %v711 = vadd.f32 0.0, %v710
      %v712 = vpop.f32.mrf.mxu0
      %713 = vmatprep.mubr.bf16.mxu0 %v500
      %714 = vmatmul.mubr.bf16.gmra.mxu0 %v499
      %v715 = vpop.f32.mrf.mxu0
      %v716 = vadd.f32 0.0, %v715
      %v717 = vpop.f32.mrf.mxu0
      %v718 = vpop.f32.mrf.mxu0
      %v719 = vadd.f32 0.0, %v718
      %v720 = vpop.f32.mrf.mxu0
      %721 = vmatprep.mubr.bf16.mxu0 %v502
      %722 = vmatmul.mubr.bf16.gmra.mxu0 %v501
      %v723 = vpop.f32.mrf.mxu0
      %v724 = vadd.f32 0.0, %v723
      %v725 = vpop.f32.mrf.mxu0
      %v726 = vpop.f32.mrf.mxu0
      %v727 = vadd.f32 0.0, %v726
      %v728 = vpop.f32.mrf.mxu0
      %729 = vmatprep.mubr.bf16.mxu0 %v504
      %730 = vmatmul.mubr.bf16.gmra.mxu0 %v503
      %v731 = vpop.f32.mrf.mxu0
      %v732 = vadd.f32 0.0, %v731
      %v733 = vpop.f32.mrf.mxu0
      %v734 = vpop.f32.mrf.mxu0
      %v735 = vadd.f32 0.0, %v734
      %v736 = vpop.f32.mrf.mxu0
      %737 = vmatprep.mubr.bf16.mxu0 %v506
      %738 = vmatmul.mubr.bf16.gmra.mxu0 %v505
      %v739 = vpop.f32.mrf.mxu0
      %v740 = vadd.f32 0.0, %v739
      %v741 = vpop.f32.mrf.mxu0
      %v742 = vpop.f32.mrf.mxu0
      %v743 = vadd.f32 0.0, %v742
      %v744 = vpop.f32.mrf.mxu0
      %745 = vmatprep.mubr.bf16.mxu0 %v508
      %746 = vmatmul.mubr.bf16.gmra.mxu0 %v507
      %v747 = vpop.f32.mrf.mxu0
      %v748 = vadd.f32 0.0, %v747
      %v749 = vpop.f32.mrf.mxu0
      %v750 = vpop.f32.mrf.mxu0
      %v751 = vadd.f32 0.0, %v750
      %v752 = vpop.f32.mrf.mxu0
      %753 = vmatprep.mubr.bf16.mxu0 %v510
      %754 = vmatmul.mubr.bf16.gmra.mxu0 %v509
      %v755 = vpop.f32.mrf.mxu0
      %v756 = vadd.f32 0.0, %v755
      %v757 = vpop.f32.mrf.mxu0
      %v758 = vpop.f32.mrf.mxu0
      %v759 = vadd.f32 0.0, %v758
      %v760 = vpop.f32.mrf.mxu0
      %761 = vmatprep.mubr.bf16.mxu0 %v512
      %762 = vmatmul.mubr.bf16.gmra.mxu0 %v511
      %v763 = vpop.f32.mrf.mxu0
      %v764 = vadd.f32 0.0, %v763
      %v765 = vpop.f32.mrf.mxu0
      %v766 = vpop.f32.mrf.mxu0
      %v767 = vadd.f32 0.0, %v766
      %v768 = vpop.f32.mrf.mxu0
      %769 = vdwg.mxu0
      %v770 = vpack.c.bf16 %v647, %v644
      %v771 = vpack.c.bf16 %v655, %v652
      %v772 = vpack.c.bf16 %v663, %v660
      %v773 = vpack.c.bf16 %v671, %v668
      %v774 = vpack.c.bf16 %v679, %v676
      %v775 = vpack.c.bf16 %v687, %v684
      %v776 = vpack.c.bf16 %v695, %v692
      %v777 = vpack.c.bf16 %v703, %v700
      %v778 = vpack.c.bf16 %v711, %v708
      %v779 = vpack.c.bf16 %v719, %v716
      %v780 = vpack.c.bf16 %v727, %v724
      %v781 = vpack.c.bf16 %v735, %v732
      %v782 = vpack.c.bf16 %v743, %v740
      %v783 = vpack.c.bf16 %v751, %v748
      %v784 = vpack.c.bf16 %v759, %v756
      %v785 = vpack.c.bf16 %v767, %v764
      %v882 = vunpack.c.l.b16 %v285
      %v883 = vunpack.c.h.b16 %v285
      %v884 = vunpack.c.l.b16 %v286
      %v885 = vunpack.c.h.b16 %v286
      %v886 = vunpack.c.l.b16 %v287
      %v887 = vunpack.c.h.b16 %v287
      %v888 = vunpack.c.l.b16 %v288
      %v889 = vunpack.c.h.b16 %v288
      %v890 = vunpack.c.l.b16 %v289
      %v891 = vunpack.c.h.b16 %v289
      %v892 = vunpack.c.l.b16 %v290
      %v893 = vunpack.c.h.b16 %v290
      %v894 = vunpack.c.l.b16 %v291
      %v895 = vunpack.c.h.b16 %v291
      %v896 = vunpack.c.l.b16 %v292
      %v897 = vunpack.c.h.b16 %v292
      %v898 = vunpack.c.l.b16 %v293
      %v899 = vunpack.c.h.b16 %v293
      %v900 = vunpack.c.l.b16 %v294
      %v901 = vunpack.c.h.b16 %v294
      %v902 = vunpack.c.l.b16 %v295
      %v903 = vunpack.c.h.b16 %v295
      %v904 = vunpack.c.l.b16 %v296
      %v905 = vunpack.c.h.b16 %v296
      %v906 = vunpack.c.l.b16 %v297
      %v907 = vunpack.c.h.b16 %v297
      %v908 = vunpack.c.l.b16 %v298
      %v909 = vunpack.c.h.b16 %v298
      %v910 = vunpack.c.l.b16 %v299
      %v911 = vunpack.c.h.b16 %v299
      %v912 = vunpack.c.l.b16 %v300
      %v913 = vunpack.c.h.b16 %v300
      %v914 = vunpack.c.l.b16 %v301
      %v915 = vunpack.c.h.b16 %v301
      %v916 = vunpack.c.l.b16 %v302
      %v917 = vunpack.c.h.b16 %v302
      %v918 = vunpack.c.l.b16 %v303
      %v919 = vunpack.c.h.b16 %v303
      %v920 = vunpack.c.l.b16 %v304
      %v921 = vunpack.c.h.b16 %v304
      %v922 = vunpack.c.l.b16 %v305
      %v923 = vunpack.c.h.b16 %v305
      %v924 = vunpack.c.l.b16 %v306
      %v925 = vunpack.c.h.b16 %v306
      %v926 = vunpack.c.l.b16 %v307
      %v927 = vunpack.c.h.b16 %v307
      %v928 = vunpack.c.l.b16 %v308
      %v929 = vunpack.c.h.b16 %v308
      %v930 = vunpack.c.l.b16 %v309
      %v931 = vunpack.c.h.b16 %v309
      %v932 = vunpack.c.l.b16 %v310
      %v933 = vunpack.c.h.b16 %v310
      %v934 = vunpack.c.l.b16 %v311
      %v935 = vunpack.c.h.b16 %v311
      %v936 = vunpack.c.l.b16 %v312
      %v937 = vunpack.c.h.b16 %v312
      %v938 = vunpack.c.l.b16 %v313
      %v939 = vunpack.c.h.b16 %v313
      %v940 = vunpack.c.l.b16 %v314
      %v941 = vunpack.c.h.b16 %v314
      %v942 = vunpack.c.l.b16 %v315
      %v943 = vunpack.c.h.b16 %v315
      %v944 = vunpack.c.l.b16 %v316
      %v945 = vunpack.c.h.b16 %v316
      %v946 = vunpack.c.l.b16 %v317
      %v947 = vunpack.c.h.b16 %v317
      %v948 = vunpack.c.l.b16 %v318
      %v949 = vunpack.c.h.b16 %v318
      %v950 = vunpack.c.l.b16 %v319
      %v951 = vunpack.c.h.b16 %v319
      %v952 = vunpack.c.l.b16 %v320
      %v953 = vunpack.c.h.b16 %v320
      %v954 = vunpack.c.l.b16 %v321
      %v955 = vunpack.c.h.b16 %v321
      %v956 = vunpack.c.l.b16 %v322
      %v957 = vunpack.c.h.b16 %v322
      %v958 = vunpack.c.l.b16 %v323
      %v959 = vunpack.c.h.b16 %v323
      %v960 = vunpack.c.l.b16 %v324
      %v961 = vunpack.c.h.b16 %v324
      %v962 = vunpack.c.l.b16 %v325
      %v963 = vunpack.c.h.b16 %v325
      %v964 = vunpack.c.l.b16 %v326
      %v965 = vunpack.c.h.b16 %v326
      %v966 = vunpack.c.l.b16 %v327
      %v967 = vunpack.c.h.b16 %v327
      %v968 = vunpack.c.l.b16 %v328
      %v969 = vunpack.c.h.b16 %v328
      %v970 = vunpack.c.l.b16 %v329
      %v971 = vunpack.c.h.b16 %v329
      %v972 = vunpack.c.l.b16 %v330
      %v973 = vunpack.c.h.b16 %v330
      %v974 = vunpack.c.l.b16 %v331
      %v975 = vunpack.c.h.b16 %v331
      %v976 = vunpack.c.l.b16 %v332
      %v977 = vunpack.c.h.b16 %v332
      %v978 = vunpack.c.l.b16 %v333
      %v979 = vunpack.c.h.b16 %v333
      %v980 = vunpack.c.l.b16 %v334
      %v981 = vunpack.c.h.b16 %v334
      %v982 = vunpack.c.l.b16 %v335
      %v983 = vunpack.c.h.b16 %v335
      %v984 = vunpack.c.l.b16 %v336
      %v985 = vunpack.c.h.b16 %v336
      %v986 = vunpack.c.l.b16 %v337
      %v987 = vunpack.c.h.b16 %v337
      %v988 = vunpack.c.l.b16 %v338
      %v989 = vunpack.c.h.b16 %v338
      %v990 = vunpack.c.l.b16 %v339
      %v991 = vunpack.c.h.b16 %v339
      %v992 = vunpack.c.l.b16 %v340
      %v993 = vunpack.c.h.b16 %v340
      %v994 = vunpack.c.l.b16 %v341
      %v995 = vunpack.c.h.b16 %v341
      %v996 = vunpack.c.l.b16 %v342
      %v997 = vunpack.c.h.b16 %v342
      %v998 = vunpack.c.l.b16 %v343
      %v999 = vunpack.c.h.b16 %v343
      %v1000 = vunpack.c.l.b16 %v344
      %v1001 = vunpack.c.h.b16 %v344
      %v1002 = vunpack.c.l.b16 %v345
      %v1003 = vunpack.c.h.b16 %v345
      %v1004 = vunpack.c.l.b16 %v346
      %v1005 = vunpack.c.h.b16 %v346
      %v1006 = vunpack.c.l.b16 %v347
      %v1007 = vunpack.c.h.b16 %v347
      %v1008 = vunpack.c.l.b16 %v348
      %v1009 = vunpack.c.h.b16 %v348
      %v1010 = vunpack.c.l.b16 %v349
      %v1011 = vunpack.c.h.b16 %v349
      %v1012 = vunpack.c.l.b16 %v350
      %v1013 = vunpack.c.h.b16 %v350
      %v1014 = vunpack.c.l.b16 %v351
      %v1015 = vunpack.c.h.b16 %v351
      %v1016 = vunpack.c.l.b16 %v352
      %v1017 = vunpack.c.h.b16 %v352
      %v1018 = vunpack.c.l.b16 %v353
      %v1019 = vunpack.c.h.b16 %v353
      %v1020 = vunpack.c.l.b16 %v354
      %v1021 = vunpack.c.h.b16 %v354
      %v1022 = vunpack.c.l.b16 %v355
      %v1023 = vunpack.c.h.b16 %v355
      %v1024 = vunpack.c.l.b16 %v356
      %v1025 = vunpack.c.h.b16 %v356
      %v1026 = vunpack.c.l.b16 %v357
      %v1027 = vunpack.c.h.b16 %v357
      %v1028 = vunpack.c.l.b16 %v358
      %v1029 = vunpack.c.h.b16 %v358
      %v1030 = vunpack.c.l.b16 %v359
      %v1031 = vunpack.c.h.b16 %v359
      %v1032 = vunpack.c.l.b16 %v360
      %v1033 = vunpack.c.h.b16 %v360
      %v1034 = vunpack.c.l.b16 %v361
      %v1035 = vunpack.c.h.b16 %v361
      %v1036 = vunpack.c.l.b16 %v362
      %v1037 = vunpack.c.h.b16 %v362
      %v1038 = vunpack.c.l.b16 %v363
      %v1039 = vunpack.c.h.b16 %v363
      %v1040 = vunpack.c.l.b16 %v364
      %v1041 = vunpack.c.h.b16 %v364
      %v1042 = vunpack.c.l.b16 %v365
      %v1043 = vunpack.c.h.b16 %v365
      %v1044 = vunpack.c.l.b16 %v366
      %v1045 = vunpack.c.h.b16 %v366
      %v1046 = vunpack.c.l.b16 %v367
      %v1047 = vunpack.c.h.b16 %v367
      %v1048 = vunpack.c.l.b16 %v368
      %v1049 = vunpack.c.h.b16 %v368
      %v1050 = vunpack.c.l.b16 %v369
      %v1051 = vunpack.c.h.b16 %v369
      %v1052 = vunpack.c.l.b16 %v370
      %v1053 = vunpack.c.h.b16 %v370
      %v1054 = vunpack.c.l.b16 %v371
      %v1055 = vunpack.c.h.b16 %v371
      %v1056 = vunpack.c.l.b16 %v372
      %v1057 = vunpack.c.h.b16 %v372
      %v1058 = vunpack.c.l.b16 %v373
      %v1059 = vunpack.c.h.b16 %v373
      %v1060 = vunpack.c.l.b16 %v374
      %v1061 = vunpack.c.h.b16 %v374
      %v1062 = vunpack.c.l.b16 %v375
      %v1063 = vunpack.c.h.b16 %v375
      %v1064 = vunpack.c.l.b16 %v376
      %v1065 = vunpack.c.h.b16 %v376
      %v1066 = vunpack.c.l.b16 %v377
      %v1067 = vunpack.c.h.b16 %v377
      %v1068 = vunpack.c.l.b16 %v378
      %v1069 = vunpack.c.h.b16 %v378
      %v1070 = vunpack.c.l.b16 %v379
      %v1071 = vunpack.c.h.b16 %v379
      %v1072 = vunpack.c.l.b16 %v380
      %v1073 = vunpack.c.h.b16 %v380
      %v1074 = vpack.c.b16 %v884, %v882
      %v1075 = vpack.c.b16 %v885, %v883
      %v1076 = vpack.c.b16 %v888, %v886
      %v1077 = vpack.c.b16 %v889, %v887
      %v1078 = vpack.c.b16 %v892, %v890
      %v1079 = vpack.c.b16 %v893, %v891
      %v1080 = vpack.c.b16 %v896, %v894
      %v1081 = vpack.c.b16 %v897, %v895
      %v1082 = vpack.c.b16 %v900, %v898
      %v1083 = vpack.c.b16 %v901, %v899
      %v1084 = vpack.c.b16 %v904, %v902
      %v1085 = vpack.c.b16 %v905, %v903
      %v1086 = vpack.c.b16 %v908, %v906
      %v1087 = vpack.c.b16 %v909, %v907
      %v1088 = vpack.c.b16 %v912, %v910
      %v1089 = vpack.c.b16 %v913, %v911
      %v1090 = vpack.c.b16 %v916, %v914
      %v1091 = vpack.c.b16 %v917, %v915
      %v1092 = vpack.c.b16 %v920, %v918
      %v1093 = vpack.c.b16 %v921, %v919
      %v1094 = vpack.c.b16 %v924, %v922
      %v1095 = vpack.c.b16 %v925, %v923
      %v1096 = vpack.c.b16 %v928, %v926
      %v1097 = vpack.c.b16 %v929, %v927
      %v1098 = vpack.c.b16 %v932, %v930
      %v1099 = vpack.c.b16 %v933, %v931
      %v1100 = vpack.c.b16 %v936, %v934
      %v1101 = vpack.c.b16 %v937, %v935
      %v1102 = vpack.c.b16 %v940, %v938
      %v1103 = vpack.c.b16 %v941, %v939
      %v1104 = vpack.c.b16 %v944, %v942
      %v1105 = vpack.c.b16 %v945, %v943
      %v1106 = vpack.c.b16 %v948, %v946
      %v1107 = vpack.c.b16 %v949, %v947
      %v1108 = vpack.c.b16 %v952, %v950
      %v1109 = vpack.c.b16 %v953, %v951
      %v1110 = vpack.c.b16 %v956, %v954
      %v1111 = vpack.c.b16 %v957, %v955
      %v1112 = vpack.c.b16 %v960, %v958
      %v1113 = vpack.c.b16 %v961, %v959
      %v1114 = vpack.c.b16 %v964, %v962
      %v1115 = vpack.c.b16 %v965, %v963
      %v1116 = vpack.c.b16 %v968, %v966
      %v1117 = vpack.c.b16 %v969, %v967
      %v1118 = vpack.c.b16 %v972, %v970
      %v1119 = vpack.c.b16 %v973, %v971
      %v1120 = vpack.c.b16 %v976, %v974
      %v1121 = vpack.c.b16 %v977, %v975
      %v1122 = vpack.c.b16 %v980, %v978
      %v1123 = vpack.c.b16 %v981, %v979
      %v1124 = vpack.c.b16 %v984, %v982
      %v1125 = vpack.c.b16 %v985, %v983
      %v1126 = vpack.c.b16 %v988, %v986
      %v1127 = vpack.c.b16 %v989, %v987
      %v1128 = vpack.c.b16 %v992, %v990
      %v1129 = vpack.c.b16 %v993, %v991
      %v1130 = vpack.c.b16 %v996, %v994
      %v1131 = vpack.c.b16 %v997, %v995
      %v1132 = vpack.c.b16 %v1000, %v998
      %v1133 = vpack.c.b16 %v1001, %v999
      %v1134 = vpack.c.b16 %v1004, %v1002
      %v1135 = vpack.c.b16 %v1005, %v1003
      %v1136 = vpack.c.b16 %v1008, %v1006
      %v1137 = vpack.c.b16 %v1009, %v1007
      %v1138 = vpack.c.b16 %v1012, %v1010
      %v1139 = vpack.c.b16 %v1013, %v1011
      %v1140 = vpack.c.b16 %v1016, %v1014
      %v1141 = vpack.c.b16 %v1017, %v1015
      %v1142 = vpack.c.b16 %v1020, %v1018
      %v1143 = vpack.c.b16 %v1021, %v1019
      %v1144 = vpack.c.b16 %v1024, %v1022
      %v1145 = vpack.c.b16 %v1025, %v1023
      %v1146 = vpack.c.b16 %v1028, %v1026
      %v1147 = vpack.c.b16 %v1029, %v1027
      %v1148 = vpack.c.b16 %v1032, %v1030
      %v1149 = vpack.c.b16 %v1033, %v1031
      %v1150 = vpack.c.b16 %v1036, %v1034
      %v1151 = vpack.c.b16 %v1037, %v1035
      %v1152 = vpack.c.b16 %v1040, %v1038
      %v1153 = vpack.c.b16 %v1041, %v1039
      %v1154 = vpack.c.b16 %v1044, %v1042
      %v1155 = vpack.c.b16 %v1045, %v1043
      %v1156 = vpack.c.b16 %v1048, %v1046
      %v1157 = vpack.c.b16 %v1049, %v1047
      %v1158 = vpack.c.b16 %v1052, %v1050
      %v1159 = vpack.c.b16 %v1053, %v1051
      %v1160 = vpack.c.b16 %v1056, %v1054
      %v1161 = vpack.c.b16 %v1057, %v1055
      %v1162 = vpack.c.b16 %v1060, %v1058
      %v1163 = vpack.c.b16 %v1061, %v1059
      %v1164 = vpack.c.b16 %v1064, %v1062
      %v1165 = vpack.c.b16 %v1065, %v1063
      %v1166 = vpack.c.b16 %v1068, %v1066
      %v1167 = vpack.c.b16 %v1069, %v1067
      %v1168 = vpack.c.b16 %v1072, %v1070
      %v1169 = vpack.c.b16 %v1073, %v1071
      %1266 = vmatprep.subr.bf16.mxu0 0
      %1267 = vmatpush1.bf16.msra.mxu0 %v777
      %1268 = vmatprep.subr.bf16.mxu0 0
      %1269 = vmatpush1.bf16.msra.mxu0 %v776
      %1270 = vmatprep.subr.bf16.mxu0 0
      %1271 = vmatpush1.bf16.msra.mxu0 %v775
      %1272 = vmatprep.subr.bf16.mxu0 0
      %1273 = vmatpush1.bf16.msra.mxu0 %v774
      %1274 = vmatprep.subr.bf16.mxu0 0
      %1275 = vmatpush1.bf16.msra.mxu0 %v773
      %1276 = vmatprep.subr.bf16.mxu0 0
      %1277 = vmatpush1.bf16.msra.mxu0 %v772
      %1278 = vmatprep.subr.bf16.mxu0 0
      %1279 = vmatpush1.bf16.msra.mxu0 %v771
      %1280 = vmatprep.subr.bf16.mxu0 0
      %1281 = vmatpush1.bf16.msra.mxu0 %v770
      %1282 = vmatprep.subr.bf16.mxu0 0
      %1283 = vmatpush2.bf16.msra.mxu0 %v785
      %1284 = vmatprep.subr.bf16.mxu0 0
      %1285 = vmatpush2.bf16.msra.mxu0 %v784
      %1286 = vmatprep.subr.bf16.mxu0 0
      %1287 = vmatpush2.bf16.msra.mxu0 %v783
      %1288 = vmatprep.subr.bf16.mxu0 0
      %1289 = vmatpush2.bf16.msra.mxu0 %v782
      %1290 = vmatprep.subr.bf16.mxu0 0
      %1291 = vmatpush2.bf16.msra.mxu0 %v781
      %1292 = vmatprep.subr.bf16.mxu0 0
      %1293 = vmatpush2.bf16.msra.mxu0 %v780
      %1294 = vmatprep.subr.bf16.mxu0 0
      %1295 = vmatpush2.bf16.msra.mxu0 %v779
      %1296 = vmatprep.subr.bf16.mxu0 0
      %1297 = vmatpush2.bf16.msra.mxu0 %v778
      %1298 = vmatprep.mubr.bf16.mxu0 %v1075
      %1299 = vmatmul.mubr.bf16.gmra.mxu0 %v1074
      %v1300 = vpop.f32.mrf.mxu0
      %v1301 = vadd.f32 0.0, %v1300
      %v1302 = vpop.f32.mrf.mxu0
      %v1303 = vpop.f32.mrf.mxu0
      %v1304 = vadd.f32 0.0, %v1303
      %v1305 = vpop.f32.mrf.mxu0
      %1306 = vmatprep.mubr.bf16.mxu0 %v1077
      %1307 = vmatmul.mubr.bf16.gmra.mxu0 %v1076
      %v1308 = vpop.f32.mrf.mxu0
      %v1309 = vadd.f32 0.0, %v1308
      %v1310 = vpop.f32.mrf.mxu0
      %v1311 = vpop.f32.mrf.mxu0
      %v1312 = vadd.f32 0.0, %v1311
      %v1313 = vpop.f32.mrf.mxu0
      %1314 = vmatprep.mubr.bf16.mxu0 %v1079
      %1315 = vmatmul.mubr.bf16.gmra.mxu0 %v1078
      %v1316 = vpop.f32.mrf.mxu0
      %v1317 = vadd.f32 0.0, %v1316
      %v1318 = vpop.f32.mrf.mxu0
      %v1319 = vpop.f32.mrf.mxu0
      %v1320 = vadd.f32 0.0, %v1319
      %v1321 = vpop.f32.mrf.mxu0
      %1322 = vmatprep.mubr.bf16.mxu0 %v1081
      %1323 = vmatmul.mubr.bf16.gmra.mxu0 %v1080
      %v1324 = vpop.f32.mrf.mxu0
      %v1325 = vadd.f32 0.0, %v1324
      %v1326 = vpop.f32.mrf.mxu0
      %v1327 = vpop.f32.mrf.mxu0
      %v1328 = vadd.f32 0.0, %v1327
      %v1329 = vpop.f32.mrf.mxu0
      %1330 = vmatprep.mubr.bf16.mxu0 %v1083
      %1331 = vmatmul.mubr.bf16.gmra.mxu0 %v1082
      %v1332 = vpop.f32.mrf.mxu0
      %v1333 = vadd.f32 0.0, %v1332
      %v1334 = vpop.f32.mrf.mxu0
      %v1335 = vpop.f32.mrf.mxu0
      %v1336 = vadd.f32 0.0, %v1335
      %v1337 = vpop.f32.mrf.mxu0
      %1338 = vmatprep.mubr.bf16.mxu0 %v1085
      %1339 = vmatmul.mubr.bf16.gmra.mxu0 %v1084
      %v1340 = vpop.f32.mrf.mxu0
      %v1341 = vadd.f32 0.0, %v1340
      %v1342 = vpop.f32.mrf.mxu0
      %v1343 = vpop.f32.mrf.mxu0
      %v1344 = vadd.f32 0.0, %v1343
      %v1345 = vpop.f32.mrf.mxu0
      %1346 = vmatprep.mubr.bf16.mxu0 %v1087
      %1347 = vmatmul.mubr.bf16.gmra.mxu0 %v1086
      %v1348 = vpop.f32.mrf.mxu0
      %v1349 = vadd.f32 0.0, %v1348
      %v1350 = vpop.f32.mrf.mxu0
      %v1351 = vpop.f32.mrf.mxu0
      %v1352 = vadd.f32 0.0, %v1351
      %v1353 = vpop.f32.mrf.mxu0
      %1354 = vmatprep.mubr.bf16.mxu0 %v1089
      %1355 = vmatmul.mubr.bf16.gmra.mxu0 %v1088
      %v1356 = vpop.f32.mrf.mxu0
      %v1357 = vadd.f32 0.0, %v1356
      %v1358 = vpop.f32.mrf.mxu0
      %v1359 = vpop.f32.mrf.mxu0
      %v1360 = vadd.f32 0.0, %v1359
      %v1361 = vpop.f32.mrf.mxu0
      %1362 = vmatprep.mubr.bf16.mxu0 %v1091
      %1363 = vmatmul.mubr.bf16.gmra.mxu0 %v1090
      %v1364 = vpop.f32.mrf.mxu0
      %v1365 = vadd.f32 0.0, %v1364
      %v1366 = vpop.f32.mrf.mxu0
      %v1367 = vpop.f32.mrf.mxu0
      %v1368 = vadd.f32 0.0, %v1367
      %v1369 = vpop.f32.mrf.mxu0
      %1370 = vmatprep.mubr.bf16.mxu0 %v1093
      %1371 = vmatmul.mubr.bf16.gmra.mxu0 %v1092
      %v1372 = vpop.f32.mrf.mxu0
      %v1373 = vadd.f32 0.0, %v1372
      %v1374 = vpop.f32.mrf.mxu0
      %v1375 = vpop.f32.mrf.mxu0
      %v1376 = vadd.f32 0.0, %v1375
      %v1377 = vpop.f32.mrf.mxu0
      %1378 = vmatprep.mubr.bf16.mxu0 %v1095
      %1379 = vmatmul.mubr.bf16.gmra.mxu0 %v1094
      %v1380 = vpop.f32.mrf.mxu0
      %v1381 = vadd.f32 0.0, %v1380
      %v1382 = vpop.f32.mrf.mxu0
      %v1383 = vpop.f32.mrf.mxu0
      %v1384 = vadd.f32 0.0, %v1383
      %v1385 = vpop.f32.mrf.mxu0
      %1386 = vmatprep.mubr.bf16.mxu0 %v1097
      %1387 = vmatmul.mubr.bf16.gmra.mxu0 %v1096
      %v1388 = vpop.f32.mrf.mxu0
      %v1389 = vadd.f32 0.0, %v1388
      %v1390 = vpop.f32.mrf.mxu0
      %v1391 = vpop.f32.mrf.mxu0
      %v1392 = vadd.f32 0.0, %v1391
      %v1393 = vpop.f32.mrf.mxu0
      %1394 = vmatprep.mubr.bf16.mxu0 %v1099
      %1395 = vmatmul.mubr.bf16.gmra.mxu0 %v1098
      %v1396 = vpop.f32.mrf.mxu0
      %v1397 = vadd.f32 0.0, %v1396
      %v1398 = vpop.f32.mrf.mxu0
      %v1399 = vpop.f32.mrf.mxu0
      %v1400 = vadd.f32 0.0, %v1399
      %v1401 = vpop.f32.mrf.mxu0
      %1402 = vmatprep.mubr.bf16.mxu0 %v1101
      %1403 = vmatmul.mubr.bf16.gmra.mxu0 %v1100
      %v1404 = vpop.f32.mrf.mxu0
      %v1405 = vadd.f32 0.0, %v1404
      %v1406 = vpop.f32.mrf.mxu0
      %v1407 = vpop.f32.mrf.mxu0
      %v1408 = vadd.f32 0.0, %v1407
      %v1409 = vpop.f32.mrf.mxu0
      %1410 = vmatprep.mubr.bf16.mxu0 %v1103
      %1411 = vmatmul.mubr.bf16.gmra.mxu0 %v1102
      %v1412 = vpop.f32.mrf.mxu0
      %v1413 = vadd.f32 0.0, %v1412
      %v1414 = vpop.f32.mrf.mxu0
      %v1415 = vpop.f32.mrf.mxu0
      %v1416 = vadd.f32 0.0, %v1415
      %v1417 = vpop.f32.mrf.mxu0
      %1418 = vmatprep.mubr.bf16.mxu0 %v1105
      %1419 = vmatmul.mubr.bf16.gmra.mxu0 %v1104
      %v1420 = vpop.f32.mrf.mxu0
      %v1421 = vadd.f32 0.0, %v1420
      %v1422 = vpop.f32.mrf.mxu0
      %v1423 = vpop.f32.mrf.mxu0
      %v1424 = vadd.f32 0.0, %v1423
      %v1425 = vpop.f32.mrf.mxu0
      %1426 = vmatprep.mubr.bf16.mxu0 %v1107
      %1427 = vmatmul.mubr.bf16.gmra.mxu0 %v1106
      %v1428 = vpop.f32.mrf.mxu0
      %v1429 = vadd.f32 0.0, %v1428
      %v1430 = vpop.f32.mrf.mxu0
      %v1431 = vpop.f32.mrf.mxu0
      %v1432 = vadd.f32 0.0, %v1431
      %v1433 = vpop.f32.mrf.mxu0
      %1434 = vmatprep.mubr.bf16.mxu0 %v1109
      %1435 = vmatmul.mubr.bf16.gmra.mxu0 %v1108
      %v1436 = vpop.f32.mrf.mxu0
      %v1437 = vadd.f32 0.0, %v1436
      %v1438 = vpop.f32.mrf.mxu0
      %v1439 = vpop.f32.mrf.mxu0
      %v1440 = vadd.f32 0.0, %v1439
      %v1441 = vpop.f32.mrf.mxu0
      %1442 = vmatprep.mubr.bf16.mxu0 %v1111
      %1443 = vmatmul.mubr.bf16.gmra.mxu0 %v1110
      %v1444 = vpop.f32.mrf.mxu0
      %v1445 = vadd.f32 0.0, %v1444
      %v1446 = vpop.f32.mrf.mxu0
      %v1447 = vpop.f32.mrf.mxu0
      %v1448 = vadd.f32 0.0, %v1447
      %v1449 = vpop.f32.mrf.mxu0
      %1450 = vmatprep.mubr.bf16.mxu0 %v1113
      %1451 = vmatmul.mubr.bf16.gmra.mxu0 %v1112
      %v1452 = vpop.f32.mrf.mxu0
      %v1453 = vadd.f32 0.0, %v1452
      %v1454 = vpop.f32.mrf.mxu0
      %v1455 = vpop.f32.mrf.mxu0
      %v1456 = vadd.f32 0.0, %v1455
      %v1457 = vpop.f32.mrf.mxu0
      %1458 = vmatprep.mubr.bf16.mxu0 %v1115
      %1459 = vmatmul.mubr.bf16.gmra.mxu0 %v1114
      %v1460 = vpop.f32.mrf.mxu0
      %v1461 = vadd.f32 0.0, %v1460
      %v1462 = vpop.f32.mrf.mxu0
      %v1463 = vpop.f32.mrf.mxu0
      %v1464 = vadd.f32 0.0, %v1463
      %v1465 = vpop.f32.mrf.mxu0
      %1466 = vmatprep.mubr.bf16.mxu0 %v1117
      %1467 = vmatmul.mubr.bf16.gmra.mxu0 %v1116
      %v1468 = vpop.f32.mrf.mxu0
      %v1469 = vadd.f32 0.0, %v1468
      %v1470 = vpop.f32.mrf.mxu0
      %v1471 = vpop.f32.mrf.mxu0
      %v1472 = vadd.f32 0.0, %v1471
      %v1473 = vpop.f32.mrf.mxu0
      %1474 = vmatprep.mubr.bf16.mxu0 %v1119
      %1475 = vmatmul.mubr.bf16.gmra.mxu0 %v1118
      %v1476 = vpop.f32.mrf.mxu0
      %v1477 = vadd.f32 0.0, %v1476
      %v1478 = vpop.f32.mrf.mxu0
      %v1479 = vpop.f32.mrf.mxu0
      %v1480 = vadd.f32 0.0, %v1479
      %v1481 = vpop.f32.mrf.mxu0
      %1482 = vmatprep.mubr.bf16.mxu0 %v1121
      %1483 = vmatmul.mubr.bf16.gmra.mxu0 %v1120
      %v1484 = vpop.f32.mrf.mxu0
      %v1485 = vadd.f32 0.0, %v1484
      %v1486 = vpop.f32.mrf.mxu0
      %v1487 = vpop.f32.mrf.mxu0
      %v1488 = vadd.f32 0.0, %v1487
      %v1489 = vpop.f32.mrf.mxu0
      %1490 = vmatprep.mubr.bf16.mxu0 %v1123
      %1491 = vmatmul.mubr.bf16.gmra.mxu0 %v1122
      %v1492 = vpop.f32.mrf.mxu0
      %v1493 = vadd.f32 0.0, %v1492
      %v1494 = vpop.f32.mrf.mxu0
      %v1495 = vpop.f32.mrf.mxu0
      %v1496 = vadd.f32 0.0, %v1495
      %v1497 = vpop.f32.mrf.mxu0
      %1498 = vmatprep.mubr.bf16.mxu0 %v1125
      %1499 = vmatmul.mubr.bf16.gmra.mxu0 %v1124
      %v1500 = vpop.f32.mrf.mxu0
      %v1501 = vadd.f32 0.0, %v1500
      %v1502 = vpop.f32.mrf.mxu0
      %v1503 = vpop.f32.mrf.mxu0
      %v1504 = vadd.f32 0.0, %v1503
      %v1505 = vpop.f32.mrf.mxu0
      %1506 = vmatprep.mubr.bf16.mxu0 %v1127
      %1507 = vmatmul.mubr.bf16.gmra.mxu0 %v1126
      %v1508 = vpop.f32.mrf.mxu0
      %v1509 = vadd.f32 0.0, %v1508
      %v1510 = vpop.f32.mrf.mxu0
      %v1511 = vpop.f32.mrf.mxu0
      %v1512 = vadd.f32 0.0, %v1511
      %v1513 = vpop.f32.mrf.mxu0
      %1514 = vmatprep.mubr.bf16.mxu0 %v1129
      %1515 = vmatmul.mubr.bf16.gmra.mxu0 %v1128
      %v1516 = vpop.f32.mrf.mxu0
      %v1517 = vadd.f32 0.0, %v1516
      %v1518 = vpop.f32.mrf.mxu0
      %v1519 = vpop.f32.mrf.mxu0
      %v1520 = vadd.f32 0.0, %v1519
      %v1521 = vpop.f32.mrf.mxu0
      %1522 = vmatprep.mubr.bf16.mxu0 %v1131
      %1523 = vmatmul.mubr.bf16.gmra.mxu0 %v1130
      %v1524 = vpop.f32.mrf.mxu0
      %v1525 = vadd.f32 0.0, %v1524
      %v1526 = vpop.f32.mrf.mxu0
      %v1527 = vpop.f32.mrf.mxu0
      %v1528 = vadd.f32 0.0, %v1527
      %v1529 = vpop.f32.mrf.mxu0
      %1530 = vmatprep.mubr.bf16.mxu0 %v1133
      %1531 = vmatmul.mubr.bf16.gmra.mxu0 %v1132
      %v1532 = vpop.f32.mrf.mxu0
      %v1533 = vadd.f32 0.0, %v1532
      %v1534 = vpop.f32.mrf.mxu0
      %v1535 = vpop.f32.mrf.mxu0
      %v1536 = vadd.f32 0.0, %v1535
      %v1537 = vpop.f32.mrf.mxu0
      %1538 = vmatprep.mubr.bf16.mxu0 %v1135
      %1539 = vmatmul.mubr.bf16.gmra.mxu0 %v1134
      %v1540 = vpop.f32.mrf.mxu0
      %v1541 = vadd.f32 0.0, %v1540
      %v1542 = vpop.f32.mrf.mxu0
      %v1543 = vpop.f32.mrf.mxu0
      %v1544 = vadd.f32 0.0, %v1543
      %v1545 = vpop.f32.mrf.mxu0
      %1546 = vmatprep.mubr.bf16.mxu0 %v1137
      %1547 = vmatmul.mubr.bf16.gmra.mxu0 %v1136
      %v1548 = vpop.f32.mrf.mxu0
      %v1549 = vadd.f32 0.0, %v1548
      %v1550 = vpop.f32.mrf.mxu0
      %v1551 = vpop.f32.mrf.mxu0
      %v1552 = vadd.f32 0.0, %v1551
      %v1553 = vpop.f32.mrf.mxu0
      %1554 = vmatprep.mubr.bf16.mxu0 %v1139
      %1555 = vmatmul.mubr.bf16.gmra.mxu0 %v1138
      %v1556 = vpop.f32.mrf.mxu0
      %v1557 = vadd.f32 0.0, %v1556
      %v1558 = vpop.f32.mrf.mxu0
      %v1559 = vpop.f32.mrf.mxu0
      %v1560 = vadd.f32 0.0, %v1559
      %v1561 = vpop.f32.mrf.mxu0
      %1562 = vmatprep.mubr.bf16.mxu0 %v1141
      %1563 = vmatmul.mubr.bf16.gmra.mxu0 %v1140
      %v1564 = vpop.f32.mrf.mxu0
      %v1565 = vadd.f32 0.0, %v1564
      %v1566 = vpop.f32.mrf.mxu0
      %v1567 = vpop.f32.mrf.mxu0
      %v1568 = vadd.f32 0.0, %v1567
      %v1569 = vpop.f32.mrf.mxu0
      %1570 = vmatprep.mubr.bf16.mxu0 %v1143
      %1571 = vmatmul.mubr.bf16.gmra.mxu0 %v1142
      %v1572 = vpop.f32.mrf.mxu0
      %v1573 = vadd.f32 0.0, %v1572
      %v1574 = vpop.f32.mrf.mxu0
      %v1575 = vpop.f32.mrf.mxu0
      %v1576 = vadd.f32 0.0, %v1575
      %v1577 = vpop.f32.mrf.mxu0
      %1578 = vmatprep.mubr.bf16.mxu0 %v1145
      %1579 = vmatmul.mubr.bf16.gmra.mxu0 %v1144
      %v1580 = vpop.f32.mrf.mxu0
      %v1581 = vadd.f32 0.0, %v1580
      %v1582 = vpop.f32.mrf.mxu0
      %v1583 = vpop.f32.mrf.mxu0
      %v1584 = vadd.f32 0.0, %v1583
      %v1585 = vpop.f32.mrf.mxu0
      %1586 = vmatprep.mubr.bf16.mxu0 %v1147
      %1587 = vmatmul.mubr.bf16.gmra.mxu0 %v1146
      %v1588 = vpop.f32.mrf.mxu0
      %v1589 = vadd.f32 0.0, %v1588
      %v1590 = vpop.f32.mrf.mxu0
      %v1591 = vpop.f32.mrf.mxu0
      %v1592 = vadd.f32 0.0, %v1591
      %v1593 = vpop.f32.mrf.mxu0
      %1594 = vmatprep.mubr.bf16.mxu0 %v1149
      %1595 = vmatmul.mubr.bf16.gmra.mxu0 %v1148
      %v1596 = vpop.f32.mrf.mxu0
      %v1597 = vadd.f32 0.0, %v1596
      %v1598 = vpop.f32.mrf.mxu0
      %v1599 = vpop.f32.mrf.mxu0
      %v1600 = vadd.f32 0.0, %v1599
      %v1601 = vpop.f32.mrf.mxu0
      %1602 = vmatprep.mubr.bf16.mxu0 %v1151
      %1603 = vmatmul.mubr.bf16.gmra.mxu0 %v1150
      %v1604 = vpop.f32.mrf.mxu0
      %v1605 = vadd.f32 0.0, %v1604
      %v1606 = vpop.f32.mrf.mxu0
      %v1607 = vpop.f32.mrf.mxu0
      %v1608 = vadd.f32 0.0, %v1607
      %v1609 = vpop.f32.mrf.mxu0
      %1610 = vmatprep.mubr.bf16.mxu0 %v1153
      %1611 = vmatmul.mubr.bf16.gmra.mxu0 %v1152
      %v1612 = vpop.f32.mrf.mxu0
      %v1613 = vadd.f32 0.0, %v1612
      %v1614 = vpop.f32.mrf.mxu0
      %v1615 = vpop.f32.mrf.mxu0
      %v1616 = vadd.f32 0.0, %v1615
      %v1617 = vpop.f32.mrf.mxu0
      %1618 = vmatprep.mubr.bf16.mxu0 %v1155
      %1619 = vmatmul.mubr.bf16.gmra.mxu0 %v1154
      %v1620 = vpop.f32.mrf.mxu0
      %v1621 = vadd.f32 0.0, %v1620
      %v1622 = vpop.f32.mrf.mxu0
      %v1623 = vpop.f32.mrf.mxu0
      %v1624 = vadd.f32 0.0, %v1623
      %v1625 = vpop.f32.mrf.mxu0
      %1626 = vmatprep.mubr.bf16.mxu0 %v1157
      %1627 = vmatmul.mubr.bf16.gmra.mxu0 %v1156
      %v1628 = vpop.f32.mrf.mxu0
      %v1629 = vadd.f32 0.0, %v1628
      %v1630 = vpop.f32.mrf.mxu0
      %v1631 = vpop.f32.mrf.mxu0
      %v1632 = vadd.f32 0.0, %v1631
      %v1633 = vpop.f32.mrf.mxu0
      %1634 = vmatprep.mubr.bf16.mxu0 %v1159
      %1635 = vmatmul.mubr.bf16.gmra.mxu0 %v1158
      %v1636 = vpop.f32.mrf.mxu0
      %v1637 = vadd.f32 0.0, %v1636
      %v1638 = vpop.f32.mrf.mxu0
      %v1639 = vpop.f32.mrf.mxu0
      %v1640 = vadd.f32 0.0, %v1639
      %v1641 = vpop.f32.mrf.mxu0
      %1642 = vmatprep.mubr.bf16.mxu0 %v1161
      %1643 = vmatmul.mubr.bf16.gmra.mxu0 %v1160
      %v1644 = vpop.f32.mrf.mxu0
      %v1645 = vadd.f32 0.0, %v1644
      %v1646 = vpop.f32.mrf.mxu0
      %v1647 = vpop.f32.mrf.mxu0
      %v1648 = vadd.f32 0.0, %v1647
      %v1649 = vpop.f32.mrf.mxu0
      %1650 = vmatprep.mubr.bf16.mxu0 %v1163
      %1651 = vmatmul.mubr.bf16.gmra.mxu0 %v1162
      %v1652 = vpop.f32.mrf.mxu0
      %v1653 = vadd.f32 0.0, %v1652
      %v1654 = vpop.f32.mrf.mxu0
      %v1655 = vpop.f32.mrf.mxu0
      %v1656 = vadd.f32 0.0, %v1655
      %v1657 = vpop.f32.mrf.mxu0
      %1658 = vmatprep.mubr.bf16.mxu0 %v1165
      %1659 = vmatmul.mubr.bf16.gmra.mxu0 %v1164
      %v1660 = vpop.f32.mrf.mxu0
      %v1661 = vadd.f32 0.0, %v1660
      %v1662 = vpop.f32.mrf.mxu0
      %v1663 = vpop.f32.mrf.mxu0
      %v1664 = vadd.f32 0.0, %v1663
      %v1665 = vpop.f32.mrf.mxu0
      %1666 = vmatprep.mubr.bf16.mxu0 %v1167
      %1667 = vmatmul.mubr.bf16.gmra.mxu0 %v1166
      %v1668 = vpop.f32.mrf.mxu0
      %v1669 = vadd.f32 0.0, %v1668
      %v1670 = vpop.f32.mrf.mxu0
      %v1671 = vpop.f32.mrf.mxu0
      %v1672 = vadd.f32 0.0, %v1671
      %v1673 = vpop.f32.mrf.mxu0
      %1674 = vmatprep.mubr.bf16.mxu0 %v1169
      %1675 = vmatmul.mubr.bf16.gmra.mxu0 %v1168
      %v1676 = vpop.f32.mrf.mxu0
      %v1677 = vadd.f32 0.0, %v1676
      %v1678 = vpop.f32.mrf.mxu0
      %v1679 = vpop.f32.mrf.mxu0
      %v1680 = vadd.f32 0.0, %v1679
      %v1681 = vpop.f32.mrf.mxu0
      %1682 = vdwg.mxu0
      %v1683 = vlaneseq
      %v1684 = vshrl.u32 %v1683, 7
      %v1685 = vsub.s32 0, %v1684
      %v1686 = vrot.slane %v416, %v1685
      %v1687 = vmul.f32 %v1301, %v1686
      %v1688 = vmul.f32 %v1304, %v1686
      %v1689 = vmul.f32 %v1309, %v1686
      %v1690 = vmul.f32 %v1312, %v1686
      %v1691 = vmul.f32 %v1317, %v1686
      %v1692 = vmul.f32 %v1320, %v1686
      %v1693 = vmul.f32 %v1325, %v1686
      %v1694 = vmul.f32 %v1328, %v1686
      %v1695 = vmul.f32 %v1333, %v1686
      %v1696 = vmul.f32 %v1336, %v1686
      %v1697 = vmul.f32 %v1341, %v1686
      %v1698 = vmul.f32 %v1344, %v1686
      %v1699 = vmul.f32 %v1349, %v1686
      %v1700 = vmul.f32 %v1352, %v1686
      %v1701 = vmul.f32 %v1357, %v1686
      %v1702 = vmul.f32 %v1360, %v1686
      %v1703 = vmul.f32 %v1365, %v1686
      %v1704 = vmul.f32 %v1368, %v1686
      %v1705 = vmul.f32 %v1373, %v1686
      %v1706 = vmul.f32 %v1376, %v1686
      %v1707 = vmul.f32 %v1381, %v1686
      %v1708 = vmul.f32 %v1384, %v1686
      %v1709 = vmul.f32 %v1389, %v1686
      %v1710 = vmul.f32 %v1392, %v1686
      %v1711 = vmul.f32 %v1397, %v1686
      %v1712 = vmul.f32 %v1400, %v1686
      %v1713 = vmul.f32 %v1405, %v1686
      %v1714 = vmul.f32 %v1408, %v1686
      %v1715 = vmul.f32 %v1413, %v1686
      %v1716 = vmul.f32 %v1416, %v1686
      %v1717 = vmul.f32 %v1421, %v1686
      %v1718 = vmul.f32 %v1424, %v1686
      %v1719 = vlaneseq
      %v1720 = vshrl.u32 %v1719, 7
      %v1721 = vsub.s32 1, %v1720
      %v1722 = vrot.slane %v416, %v1721
      %v1723 = vmul.f32 %v1429, %v1722
      %v1724 = vmul.f32 %v1432, %v1722
      %v1725 = vmul.f32 %v1437, %v1722
      %v1726 = vmul.f32 %v1440, %v1722
      %v1727 = vmul.f32 %v1445, %v1722
      %v1728 = vmul.f32 %v1448, %v1722
      %v1729 = vmul.f32 %v1453, %v1722
      %v1730 = vmul.f32 %v1456, %v1722
      %v1731 = vmul.f32 %v1461, %v1722
      %v1732 = vmul.f32 %v1464, %v1722
      %v1733 = vmul.f32 %v1469, %v1722
      %v1734 = vmul.f32 %v1472, %v1722
      %v1735 = vmul.f32 %v1477, %v1722
      %v1736 = vmul.f32 %v1480, %v1722
      %v1737 = vmul.f32 %v1485, %v1722
      %v1738 = vmul.f32 %v1488, %v1722
      %v1739 = vmul.f32 %v1493, %v1722
      %v1740 = vmul.f32 %v1496, %v1722
      %v1741 = vmul.f32 %v1501, %v1722
      %v1742 = vmul.f32 %v1504, %v1722
      %v1743 = vmul.f32 %v1509, %v1722
      %v1744 = vmul.f32 %v1512, %v1722
      %v1745 = vmul.f32 %v1517, %v1722
      %v1746 = vmul.f32 %v1520, %v1722
      %v1747 = vmul.f32 %v1525, %v1722
      %v1748 = vmul.f32 %v1528, %v1722
      %v1749 = vmul.f32 %v1533, %v1722
      %v1750 = vmul.f32 %v1536, %v1722
      %v1751 = vmul.f32 %v1541, %v1722
      %v1752 = vmul.f32 %v1544, %v1722
      %v1753 = vmul.f32 %v1549, %v1722
      %v1754 = vmul.f32 %v1552, %v1722
      %v1755 = vadd.f32 %v1687, %v1723
      %v1756 = vadd.f32 %v1688, %v1724
      %v1757 = vadd.f32 %v1689, %v1725
      %v1758 = vadd.f32 %v1690, %v1726
      %v1759 = vadd.f32 %v1691, %v1727
      %v1760 = vadd.f32 %v1692, %v1728
      %v1761 = vadd.f32 %v1693, %v1729
      %v1762 = vadd.f32 %v1694, %v1730
      %v1763 = vadd.f32 %v1695, %v1731
      %v1764 = vadd.f32 %v1696, %v1732
      %v1765 = vadd.f32 %v1697, %v1733
      %v1766 = vadd.f32 %v1698, %v1734
      %v1767 = vadd.f32 %v1699, %v1735
      %v1768 = vadd.f32 %v1700, %v1736
      %v1769 = vadd.f32 %v1701, %v1737
      %v1770 = vadd.f32 %v1702, %v1738
      %v1771 = vadd.f32 %v1703, %v1739
      %v1772 = vadd.f32 %v1704, %v1740
      %v1773 = vadd.f32 %v1705, %v1741
      %v1774 = vadd.f32 %v1706, %v1742
      %v1775 = vadd.f32 %v1707, %v1743
      %v1776 = vadd.f32 %v1708, %v1744
      %v1777 = vadd.f32 %v1709, %v1745
      %v1778 = vadd.f32 %v1710, %v1746
      %v1779 = vadd.f32 %v1711, %v1747
      %v1780 = vadd.f32 %v1712, %v1748
      %v1781 = vadd.f32 %v1713, %v1749
      %v1782 = vadd.f32 %v1714, %v1750
      %v1783 = vadd.f32 %v1715, %v1751
      %v1784 = vadd.f32 %v1716, %v1752
      %v1785 = vadd.f32 %v1717, %v1753
      %v1786 = vadd.f32 %v1718, %v1754
      %v1787 = vlaneseq
      %v1788 = vshrl.u32 %v1787, 7
      %v1789 = vsub.s32 2, %v1788
      %v1790 = vrot.slane %v416, %v1789
      %v1791 = vmul.f32 %v1557, %v1790
      %v1792 = vmul.f32 %v1560, %v1790
      %v1793 = vmul.f32 %v1565, %v1790
      %v1794 = vmul.f32 %v1568, %v1790
      %v1795 = vmul.f32 %v1573, %v1790
      %v1796 = vmul.f32 %v1576, %v1790
      %v1797 = vmul.f32 %v1581, %v1790
      %v1798 = vmul.f32 %v1584, %v1790
      %v1799 = vmul.f32 %v1589, %v1790
      %v1800 = vmul.f32 %v1592, %v1790
      %v1801 = vmul.f32 %v1597, %v1790
      %v1802 = vmul.f32 %v1600, %v1790
      %v1803 = vmul.f32 %v1605, %v1790
      %v1804 = vmul.f32 %v1608, %v1790
      %v1805 = vmul.f32 %v1613, %v1790
      %v1806 = vmul.f32 %v1616, %v1790
      %v1807 = vmul.f32 %v1621, %v1790
      %v1808 = vmul.f32 %v1624, %v1790
      %v1809 = vmul.f32 %v1629, %v1790
      %v1810 = vmul.f32 %v1632, %v1790
      %v1811 = vmul.f32 %v1637, %v1790
      %v1812 = vmul.f32 %v1640, %v1790
      %v1813 = vmul.f32 %v1645, %v1790
      %v1814 = vmul.f32 %v1648, %v1790
      %v1815 = vmul.f32 %v1653, %v1790
      %v1816 = vmul.f32 %v1656, %v1790
      %v1817 = vmul.f32 %v1661, %v1790
      %v1818 = vmul.f32 %v1664, %v1790
      %v1819 = vmul.f32 %v1669, %v1790
      %v1820 = vmul.f32 %v1672, %v1790
      %v1821 = vmul.f32 %v1677, %v1790
      %v1822 = vmul.f32 %v1680, %v1790
      %v1823 = vadd.f32 %v1755, %v1791
      %v1824 = vadd.f32 %v1756, %v1792
      %v1825 = vadd.f32 %v1757, %v1793
      %v1826 = vadd.f32 %v1758, %v1794
      %v1827 = vadd.f32 %v1759, %v1795
      %v1828 = vadd.f32 %v1760, %v1796
      %v1829 = vadd.f32 %v1761, %v1797
      %v1830 = vadd.f32 %v1762, %v1798
      %v1831 = vadd.f32 %v1763, %v1799
      %v1832 = vadd.f32 %v1764, %v1800
      %v1833 = vadd.f32 %v1765, %v1801
      %v1834 = vadd.f32 %v1766, %v1802
      %v1835 = vadd.f32 %v1767, %v1803
      %v1836 = vadd.f32 %v1768, %v1804
      %v1837 = vadd.f32 %v1769, %v1805
      %v1838 = vadd.f32 %v1770, %v1806
      %v1839 = vadd.f32 %v1771, %v1807
      %v1840 = vadd.f32 %v1772, %v1808
      %v1841 = vadd.f32 %v1773, %v1809
      %v1842 = vadd.f32 %v1774, %v1810
      %v1843 = vadd.f32 %v1775, %v1811
      %v1844 = vadd.f32 %v1776, %v1812
      %v1845 = vadd.f32 %v1777, %v1813
      %v1846 = vadd.f32 %v1778, %v1814
      %v1847 = vadd.f32 %v1779, %v1815
      %v1848 = vadd.f32 %v1780, %v1816
      %v1849 = vadd.f32 %v1781, %v1817
      %v1850 = vadd.f32 %v1782, %v1818
      %v1851 = vadd.f32 %v1783, %v1819
      %v1852 = vadd.f32 %v1784, %v1820
      %v1853 = vadd.f32 %v1785, %v1821
      %v1854 = vadd.f32 %v1786, %v1822
      %v1855 = vadd.f32 %v1823, %v384
      %v1856 = vadd.f32 %v1824, %v385
      %v1857 = vadd.f32 %v1825, %v386
      %v1858 = vadd.f32 %v1826, %v387
      %v1859 = vadd.f32 %v1827, %v388
      %v1860 = vadd.f32 %v1828, %v389
      %v1861 = vadd.f32 %v1829, %v390
      %v1862 = vadd.f32 %v1830, %v391
      %v1863 = vadd.f32 %v1831, %v392
      %v1864 = vadd.f32 %v1832, %v393
      %v1865 = vadd.f32 %v1833, %v394
      %v1866 = vadd.f32 %v1834, %v395
      %v1867 = vadd.f32 %v1835, %v396
      %v1868 = vadd.f32 %v1836, %v397
      %v1869 = vadd.f32 %v1837, %v398
      %v1870 = vadd.f32 %v1838, %v399
      %v1871 = vadd.f32 %v1839, %v400
      %v1872 = vadd.f32 %v1840, %v401
      %v1873 = vadd.f32 %v1841, %v402
      %v1874 = vadd.f32 %v1842, %v403
      %v1875 = vadd.f32 %v1843, %v404
      %v1876 = vadd.f32 %v1844, %v405
      %v1877 = vadd.f32 %v1845, %v406
      %v1878 = vadd.f32 %v1846, %v407
      %v1879 = vadd.f32 %v1847, %v408
      %v1880 = vadd.f32 %v1848, %v409
      %v1881 = vadd.f32 %v1849, %v410
      %v1882 = vadd.f32 %v1850, %v411
      %v1883 = vadd.f32 %v1851, %v412
      %v1884 = vadd.f32 %v1852, %v413
      %v1885 = vadd.f32 %v1853, %v414
      %v1886 = vadd.f32 %v1854, %v415
      %v1887 = vmax.f32 %v1855, 0.0
      %v1888 = vmax.f32 %v1856, 0.0
      %v1889 = vmax.f32 %v1857, 0.0
      %v1890 = vmax.f32 %v1858, 0.0
      %v1891 = vmax.f32 %v1859, 0.0
      %v1892 = vmax.f32 %v1860, 0.0
      %v1893 = vmax.f32 %v1861, 0.0
      %v1894 = vmax.f32 %v1862, 0.0
      %v1895 = vmax.f32 %v1863, 0.0
      %v1896 = vmax.f32 %v1864, 0.0
      %v1897 = vmax.f32 %v1865, 0.0
      %v1898 = vmax.f32 %v1866, 0.0
      %v1899 = vmax.f32 %v1867, 0.0
      %v1900 = vmax.f32 %v1868, 0.0
      %v1901 = vmax.f32 %v1869, 0.0
      %v1902 = vmax.f32 %v1870, 0.0
      %v1903 = vmax.f32 %v1871, 0.0
      %v1904 = vmax.f32 %v1872, 0.0
      %v1905 = vmax.f32 %v1873, 0.0
      %v1906 = vmax.f32 %v1874, 0.0
      %v1907 = vmax.f32 %v1875, 0.0
      %v1908 = vmax.f32 %v1876, 0.0
      %v1909 = vmax.f32 %v1877, 0.0
      %v1910 = vmax.f32 %v1878, 0.0
      %v1911 = vmax.f32 %v1879, 0.0
      %v1912 = vmax.f32 %v1880, 0.0
      %v1913 = vmax.f32 %v1881, 0.0
      %v1914 = vmax.f32 %v1882, 0.0
      %v1915 = vmax.f32 %v1883, 0.0
      %v1916 = vmax.f32 %v1884, 0.0
      %v1917 = vmax.f32 %v1885, 0.0
      %v1918 = vmax.f32 %v1886, 0.0
      %v1919 = vpack.c.bf16 %v1888, %v1887
      %v1920 = vpack.c.bf16 %v1890, %v1889
      %v1921 = vpack.c.bf16 %v1892, %v1891
      %v1922 = vpack.c.bf16 %v1894, %v1893
      %v1923 = vpack.c.bf16 %v1896, %v1895
      %v1924 = vpack.c.bf16 %v1898, %v1897
      %v1925 = vpack.c.bf16 %v1900, %v1899
      %v1926 = vpack.c.bf16 %v1902, %v1901
      %v1927 = vpack.c.bf16 %v1904, %v1903
      %v1928 = vpack.c.bf16 %v1906, %v1905
      %v1929 = vpack.c.bf16 %v1908, %v1907
      %v1930 = vpack.c.bf16 %v1910, %v1909
      %v1931 = vpack.c.bf16 %v1912, %v1911
      %v1932 = vpack.c.bf16 %v1914, %v1913
      %v1933 = vpack.c.bf16 %v1916, %v1915
      %v1934 = vpack.c.bf16 %v1918, %v1917
      %v1938 = vunpack.c.l.b16 %v381
      %v1939 = vunpack.c.h.b16 %v381
      %v1940 = vunpack.c.l.b16 %v382
      %v1941 = vunpack.c.h.b16 %v382
      %v1942 = vunpack.c.l.b16 %v383
      %v1943 = vunpack.c.h.b16 %v383
      %v1944 = vpack.c.b16 %v1940, %v1938
      %v1945 = vpack.c.b16 %v1941, %v1939
      %v1946 = vpack.c.b16 %v1942, %v1942
      %v1947 = vpack.c.b16 %v1943, %v1943
      %vm1950 = vcmask 195584
      %v1952 = vsel %vm1950, %v1919, 0
      %v1955 = vsel %vm1950, %v1920, 0
      %v1958 = vsel %vm1950, %v1921, 0
      %v1961 = vsel %vm1950, %v1922, 0
      %v1964 = vsel %vm1950, %v1923, 0
      %v1967 = vsel %vm1950, %v1924, 0
      %v1970 = vsel %vm1950, %v1925, 0
      %v1973 = vsel %vm1950, %v1926, 0
      %v1976 = vsel %vm1950, %v1927, 0
      %v1979 = vsel %vm1950, %v1928, 0
      %v1982 = vsel %vm1950, %v1929, 0
      %v1985 = vsel %vm1950, %v1930, 0
      %v1988 = vsel %vm1950, %v1931, 0
      %v1991 = vsel %vm1950, %v1932, 0
      %v1994 = vsel %vm1950, %v1933, 0
      %v1997 = vsel %vm1950, %v1934, 0
      %vm1999 = vcmask 1043456
      %v2001 = vsel %vm1999, %v1946, 0
      %v2004 = vsel %vm1999, %v1947, 0
      %2006 = vmatprep.subr.bf16.mxu0 0
      %2007 = vmatpush1.bf16.msra.mxu0 0
      %2008 = vmatprep.subr.bf16.mxu0 0
      %2009 = vmatpush1.bf16.msra.mxu0 0
      %2010 = vmatprep.subr.bf16.mxu0 0
      %2011 = vmatpush1.bf16.msra.mxu0 0
      %2012 = vmatprep.subr.bf16.mxu0 0
      %2013 = vmatpush1.bf16.msra.mxu0 0
      %2014 = vmatprep.subr.bf16.mxu0 0
      %2015 = vmatpush1.bf16.msra.mxu0 0
      %2016 = vmatprep.subr.bf16.mxu0 0
      %2017 = vmatpush1.bf16.msra.mxu0 0
      %2018 = vmatprep.subr.bf16.mxu0 %v2004
      %2019 = vmatpush1.bf16.msra.mxu0 %v2001
      %2020 = vmatprep.subr.bf16.mxu0 %v1945
      %2021 = vmatpush1.bf16.msra.mxu0 %v1944
      %2022 = vmatprep.subr.bf16.mxu0 0
      %2023 = vmatpush2.bf16.msra.mxu0 0
      %2024 = vmatprep.subr.bf16.mxu0 0
      %2025 = vmatpush2.bf16.msra.mxu0 0
      %2026 = vmatprep.subr.bf16.mxu0 0
      %2027 = vmatpush2.bf16.msra.mxu0 0
      %2028 = vmatprep.subr.bf16.mxu0 0
      %2029 = vmatpush2.bf16.msra.mxu0 0
      %2030 = vmatprep.subr.bf16.mxu0 0
      %2031 = vmatpush2.bf16.msra.mxu0 0
      %2032 = vmatprep.subr.bf16.mxu0 0
      %2033 = vmatpush2.bf16.msra.mxu0 0
      %2034 = vmatprep.subr.bf16.mxu0 0
      %2035 = vmatpush2.bf16.msra.mxu0 0
      %2036 = vmatprep.subr.bf16.mxu0 0
      %2037 = vmatpush2.bf16.msra.mxu0 0
      %2038 = vmatprep.mubr.bf16.mxu0 0
      %2039 = vmatmul.mubr.bf16.gmra.mxu0 %v1952
      %v2040 = vpop.f32.mrf.mxu0
      %v2041 = vadd.f32 0.0, %v2040
      %v2042 = vpop.f32.mrf.mxu0
      %v2043 = vadd.f32 0.0, %v2042
      %v2044 = vpop.f32.mrf.mxu0
      %v2045 = vadd.f32 0.0, %v2044
      %v2046 = vpop.f32.mrf.mxu0
      %v2047 = vadd.f32 0.0, %v2046
      %2048 = vmatprep.mubr.bf16.mxu0 0
      %2049 = vmatmul.mubr.bf16.gmra.mxu0 %v1955
      %v2050 = vpop.f32.mrf.mxu0
      %v2051 = vadd.f32 0.0, %v2050
      %v2052 = vpop.f32.mrf.mxu0
      %v2053 = vadd.f32 0.0, %v2052
      %v2054 = vpop.f32.mrf.mxu0
      %v2055 = vadd.f32 0.0, %v2054
      %v2056 = vpop.f32.mrf.mxu0
      %v2057 = vadd.f32 0.0, %v2056
      %2058 = vmatprep.mubr.bf16.mxu0 0
      %2059 = vmatmul.mubr.bf16.gmra.mxu0 %v1958
      %v2060 = vpop.f32.mrf.mxu0
      %v2061 = vadd.f32 0.0, %v2060
      %v2062 = vpop.f32.mrf.mxu0
      %v2063 = vadd.f32 0.0, %v2062
      %v2064 = vpop.f32.mrf.mxu0
      %v2065 = vadd.f32 0.0, %v2064
      %v2066 = vpop.f32.mrf.mxu0
      %v2067 = vadd.f32 0.0, %v2066
      %2068 = vmatprep.mubr.bf16.mxu0 0
      %2069 = vmatmul.mubr.bf16.gmra.mxu0 %v1961
      %v2070 = vpop.f32.mrf.mxu0
      %v2071 = vadd.f32 0.0, %v2070
      %v2072 = vpop.f32.mrf.mxu0
      %v2073 = vadd.f32 0.0, %v2072
      %v2074 = vpop.f32.mrf.mxu0
      %v2075 = vadd.f32 0.0, %v2074
      %v2076 = vpop.f32.mrf.mxu0
      %v2077 = vadd.f32 0.0, %v2076
      %2078 = vmatprep.mubr.bf16.mxu0 0
      %2079 = vmatmul.mubr.bf16.gmra.mxu0 %v1964
      %v2080 = vpop.f32.mrf.mxu0
      %v2081 = vadd.f32 0.0, %v2080
      %v2082 = vpop.f32.mrf.mxu0
      %v2083 = vadd.f32 0.0, %v2082
      %v2084 = vpop.f32.mrf.mxu0
      %v2085 = vadd.f32 0.0, %v2084
      %v2086 = vpop.f32.mrf.mxu0
      %v2087 = vadd.f32 0.0, %v2086
      %2088 = vmatprep.mubr.bf16.mxu0 0
      %2089 = vmatmul.mubr.bf16.gmra.mxu0 %v1967
      %v2090 = vpop.f32.mrf.mxu0
      %v2091 = vadd.f32 0.0, %v2090
      %v2092 = vpop.f32.mrf.mxu0
      %v2093 = vadd.f32 0.0, %v2092
      %v2094 = vpop.f32.mrf.mxu0
      %v2095 = vadd.f32 0.0, %v2094
      %v2096 = vpop.f32.mrf.mxu0
      %v2097 = vadd.f32 0.0, %v2096
      %2098 = vmatprep.mubr.bf16.mxu0 0
      %2099 = vmatmul.mubr.bf16.gmra.mxu0 %v1970
      %v2100 = vpop.f32.mrf.mxu0
      %v2101 = vadd.f32 0.0, %v2100
      %v2102 = vpop.f32.mrf.mxu0
      %v2103 = vadd.f32 0.0, %v2102
      %v2104 = vpop.f32.mrf.mxu0
      %v2105 = vadd.f32 0.0, %v2104
      %v2106 = vpop.f32.mrf.mxu0
      %v2107 = vadd.f32 0.0, %v2106
      %2108 = vmatprep.mubr.bf16.mxu0 0
      %2109 = vmatmul.mubr.bf16.gmra.mxu0 %v1973
      %v2110 = vpop.f32.mrf.mxu0
      %v2111 = vadd.f32 0.0, %v2110
      %v2112 = vpop.f32.mrf.mxu0
      %v2113 = vadd.f32 0.0, %v2112
      %v2114 = vpop.f32.mrf.mxu0
      %v2115 = vadd.f32 0.0, %v2114
      %v2116 = vpop.f32.mrf.mxu0
      %v2117 = vadd.f32 0.0, %v2116
      %2118 = vmatprep.mubr.bf16.mxu0 0
      %2119 = vmatmul.mubr.bf16.gmra.mxu0 %v1976
      %v2120 = vpop.f32.mrf.mxu0
      %v2121 = vadd.f32 0.0, %v2120
      %v2122 = vpop.f32.mrf.mxu0
      %v2123 = vadd.f32 0.0, %v2122
      %v2124 = vpop.f32.mrf.mxu0
      %v2125 = vadd.f32 0.0, %v2124
      %v2126 = vpop.f32.mrf.mxu0
      %v2127 = vadd.f32 0.0, %v2126
      %2128 = vmatprep.mubr.bf16.mxu0 0
      %2129 = vmatmul.mubr.bf16.gmra.mxu0 %v1979
      %v2130 = vpop.f32.mrf.mxu0
      %v2131 = vadd.f32 0.0, %v2130
      %v2132 = vpop.f32.mrf.mxu0
      %v2133 = vadd.f32 0.0, %v2132
      %v2134 = vpop.f32.mrf.mxu0
      %v2135 = vadd.f32 0.0, %v2134
      %v2136 = vpop.f32.mrf.mxu0
      %v2137 = vadd.f32 0.0, %v2136
      %2138 = vmatprep.mubr.bf16.mxu0 0
      %2139 = vmatmul.mubr.bf16.gmra.mxu0 %v1982
      %v2140 = vpop.f32.mrf.mxu0
      %v2141 = vadd.f32 0.0, %v2140
      %v2142 = vpop.f32.mrf.mxu0
      %v2143 = vadd.f32 0.0, %v2142
      %v2144 = vpop.f32.mrf.mxu0
      %v2145 = vadd.f32 0.0, %v2144
      %v2146 = vpop.f32.mrf.mxu0
      %v2147 = vadd.f32 0.0, %v2146
      %2148 = vmatprep.mubr.bf16.mxu0 0
      %2149 = vmatmul.mubr.bf16.gmra.mxu0 %v1985
      %v2150 = vpop.f32.mrf.mxu0
      %v2151 = vadd.f32 0.0, %v2150
      %v2152 = vpop.f32.mrf.mxu0
      %v2153 = vadd.f32 0.0, %v2152
      %v2154 = vpop.f32.mrf.mxu0
      %v2155 = vadd.f32 0.0, %v2154
      %v2156 = vpop.f32.mrf.mxu0
      %v2157 = vadd.f32 0.0, %v2156
      %2158 = vmatprep.mubr.bf16.mxu0 0
      %2159 = vmatmul.mubr.bf16.gmra.mxu0 %v1988
      %v2160 = vpop.f32.mrf.mxu0
      %v2161 = vadd.f32 0.0, %v2160
      %v2162 = vpop.f32.mrf.mxu0
      %v2163 = vadd.f32 0.0, %v2162
      %v2164 = vpop.f32.mrf.mxu0
      %v2165 = vadd.f32 0.0, %v2164
      %v2166 = vpop.f32.mrf.mxu0
      %v2167 = vadd.f32 0.0, %v2166
      %2168 = vmatprep.mubr.bf16.mxu0 0
      %2169 = vmatmul.mubr.bf16.gmra.mxu0 %v1991
      %v2170 = vpop.f32.mrf.mxu0
      %v2171 = vadd.f32 0.0, %v2170
      %v2172 = vpop.f32.mrf.mxu0
      %v2173 = vadd.f32 0.0, %v2172
      %v2174 = vpop.f32.mrf.mxu0
      %v2175 = vadd.f32 0.0, %v2174
      %v2176 = vpop.f32.mrf.mxu0
      %v2177 = vadd.f32 0.0, %v2176
      %2178 = vmatprep.mubr.bf16.mxu0 0
      %2179 = vmatmul.mubr.bf16.gmra.mxu0 %v1994
      %v2180 = vpop.f32.mrf.mxu0
      %v2181 = vadd.f32 0.0, %v2180
      %v2182 = vpop.f32.mrf.mxu0
      %v2183 = vadd.f32 0.0, %v2182
      %v2184 = vpop.f32.mrf.mxu0
      %v2185 = vadd.f32 0.0, %v2184
      %v2186 = vpop.f32.mrf.mxu0
      %v2187 = vadd.f32 0.0, %v2186
      %2188 = vmatprep.mubr.bf16.mxu0 0
      %2189 = vmatmul.mubr.bf16.gmra.mxu0 %v1997
      %v2190 = vpop.f32.mrf.mxu0
      %v2191 = vadd.f32 0.0, %v2190
      %v2192 = vpop.f32.mrf.mxu0
      %v2193 = vadd.f32 0.0, %v2192
      %v2194 = vpop.f32.mrf.mxu0
      %v2195 = vadd.f32 0.0, %v2194
      %v2196 = vpop.f32.mrf.mxu0
      %v2197 = vadd.f32 0.0, %v2196
      %2198 = vdwg.mxu0
      %v2199 = vmul.f32 %v2041, 0.5
      %v2200 = vmul.f32 %v2043, 0.5
      %v2201 = vmul.f32 %v2045, 0.5
      %v2202 = vmul.f32 %v2047, 0.5
      %v2203 = vmul.f32 %v2051, 0.5
      %v2204 = vmul.f32 %v2053, 0.5
      %v2205 = vmul.f32 %v2055, 0.5
      %v2206 = vmul.f32 %v2057, 0.5
      %v2207 = vmul.f32 %v2061, 0.5
      %v2208 = vmul.f32 %v2063, 0.5
      %v2209 = vmul.f32 %v2065, 0.5
      %v2210 = vmul.f32 %v2067, 0.5
      %v2211 = vmul.f32 %v2071, 0.5
      %v2212 = vmul.f32 %v2073, 0.5
      %v2213 = vmul.f32 %v2075, 0.5
      %v2214 = vmul.f32 %v2077, 0.5
      %v2215 = vmul.f32 %v2081, 0.5
      %v2216 = vmul.f32 %v2083, 0.5
      %v2217 = vmul.f32 %v2085, 0.5
      %v2218 = vmul.f32 %v2087, 0.5
      %v2219 = vmul.f32 %v2091, 0.5
      %v2220 = vmul.f32 %v2093, 0.5
      %v2221 = vmul.f32 %v2095, 0.5
      %v2222 = vmul.f32 %v2097, 0.5
      %v2223 = vmul.f32 %v2101, 0.5
      %v2224 = vmul.f32 %v2103, 0.5
      %v2225 = vmul.f32 %v2105, 0.5
      %v2226 = vmul.f32 %v2107, 0.5
      %v2227 = vmul.f32 %v2111, 0.5
      %v2228 = vmul.f32 %v2113, 0.5
      %v2229 = vmul.f32 %v2115, 0.5
      %v2230 = vmul.f32 %v2117, 0.5
      %v2231 = vmul.f32 %v2121, 0.5
      %v2232 = vmul.f32 %v2123, 0.5
      %v2233 = vmul.f32 %v2125, 0.5
      %v2234 = vmul.f32 %v2127, 0.5
      %v2235 = vmul.f32 %v2131, 0.5
      %v2236 = vmul.f32 %v2133, 0.5
      %v2237 = vmul.f32 %v2135, 0.5
      %v2238 = vmul.f32 %v2137, 0.5
      %v2239 = vmul.f32 %v2141, 0.5
      %v2240 = vmul.f32 %v2143, 0.5
      %v2241 = vmul.f32 %v2145, 0.5
      %v2242 = vmul.f32 %v2147, 0.5
      %v2243 = vmul.f32 %v2151, 0.5
      %v2244 = vmul.f32 %v2153, 0.5
      %v2245 = vmul.f32 %v2155, 0.5
      %v2246 = vmul.f32 %v2157, 0.5
      %v2247 = vmul.f32 %v2161, 0.5
      %v2248 = vmul.f32 %v2163, 0.5
      %v2249 = vmul.f32 %v2165, 0.5
      %v2250 = vmul.f32 %v2167, 0.5
      %v2251 = vmul.f32 %v2171, 0.5
      %v2252 = vmul.f32 %v2173, 0.5
      %v2253 = vmul.f32 %v2175, 0.5
      %v2254 = vmul.f32 %v2177, 0.5
      %v2255 = vmul.f32 %v2181, 0.5
      %v2256 = vmul.f32 %v2183, 0.5
      %v2257 = vmul.f32 %v2185, 0.5
      %v2258 = vmul.f32 %v2187, 0.5
      %v2259 = vmul.f32 %v2191, 0.5
      %v2260 = vmul.f32 %v2193, 0.5
      %v2261 = vmul.f32 %v2195, 0.5
      %v2262 = vmul.f32 %v2197, 0.5
      %v2263 = vtanh.pop %v2199
      %v2264 = vtanh.pop %v2200
      %v2265 = vtanh.pop %v2201
      %v2266 = vtanh.pop %v2202
      %v2267 = vtanh.pop %v2203
      %v2268 = vtanh.pop %v2204
      %v2269 = vtanh.pop %v2205
      %v2270 = vtanh.pop %v2206
      %v2271 = vtanh.pop %v2207
      %v2272 = vtanh.pop %v2208
      %v2273 = vtanh.pop %v2209
      %v2274 = vtanh.pop %v2210
      %v2275 = vtanh.pop %v2211
      %v2276 = vtanh.pop %v2212
      %v2277 = vtanh.pop %v2213
      %v2278 = vtanh.pop %v2214
      %v2279 = vtanh.pop %v2215
      %v2280 = vtanh.pop %v2216
      %v2281 = vtanh.pop %v2217
      %v2282 = vtanh.pop %v2218
      %v2283 = vtanh.pop %v2219
      %v2284 = vtanh.pop %v2220
      %v2285 = vtanh.pop %v2221
      %v2286 = vtanh.pop %v2222
      %v2287 = vtanh.pop %v2223
      %v2288 = vtanh.pop %v2224
      %v2289 = vtanh.pop %v2225
      %v2290 = vtanh.pop %v2226
      %v2291 = vtanh.pop %v2227
      %v2292 = vtanh.pop %v2228
      %v2293 = vtanh.pop %v2229
      %v2294 = vtanh.pop %v2230
      %v2295 = vtanh.pop %v2231
      %v2296 = vtanh.pop %v2232
      %v2297 = vtanh.pop %v2233
      %v2298 = vtanh.pop %v2234
      %v2299 = vtanh.pop %v2235
      %v2300 = vtanh.pop %v2236
      %v2301 = vtanh.pop %v2237
      %v2302 = vtanh.pop %v2238
      %v2303 = vtanh.pop %v2239
      %v2304 = vtanh.pop %v2240
      %v2305 = vtanh.pop %v2241
      %v2306 = vtanh.pop %v2242
      %v2307 = vtanh.pop %v2243
      %v2308 = vtanh.pop %v2244
      %v2309 = vtanh.pop %v2245
      %v2310 = vtanh.pop %v2246
      %v2311 = vtanh.pop %v2247
      %v2312 = vtanh.pop %v2248
      %v2313 = vtanh.pop %v2249
      %v2314 = vtanh.pop %v2250
      %v2315 = vtanh.pop %v2251
      %v2316 = vtanh.pop %v2252
      %v2317 = vtanh.pop %v2253
      %v2318 = vtanh.pop %v2254
      %v2319 = vtanh.pop %v2255
      %v2320 = vtanh.pop %v2256
      %v2321 = vtanh.pop %v2257
      %v2322 = vtanh.pop %v2258
      %v2323 = vtanh.pop %v2259
      %v2324 = vtanh.pop %v2260
      %v2325 = vtanh.pop %v2261
      %v2326 = vtanh.pop %v2262
      %v2327 = vadd.f32 %v2263, 1.0
      %v2328 = vadd.f32 %v2264, 1.0
      %v2329 = vadd.f32 %v2265, 1.0
      %v2330 = vadd.f32 %v2266, 1.0
      %v2331 = vadd.f32 %v2267, 1.0
      %v2332 = vadd.f32 %v2268, 1.0
      %v2333 = vadd.f32 %v2269, 1.0
      %v2334 = vadd.f32 %v2270, 1.0
      %v2335 = vadd.f32 %v2271, 1.0
      %v2336 = vadd.f32 %v2272, 1.0
      %v2337 = vadd.f32 %v2273, 1.0
      %v2338 = vadd.f32 %v2274, 1.0
      %v2339 = vadd.f32 %v2275, 1.0
      %v2340 = vadd.f32 %v2276, 1.0
      %v2341 = vadd.f32 %v2277, 1.0
      %v2342 = vadd.f32 %v2278, 1.0
      %v2343 = vadd.f32 %v2279, 1.0
      %v2344 = vadd.f32 %v2280, 1.0
      %v2345 = vadd.f32 %v2281, 1.0
      %v2346 = vadd.f32 %v2282, 1.0
      %v2347 = vadd.f32 %v2283, 1.0
      %v2348 = vadd.f32 %v2284, 1.0
      %v2349 = vadd.f32 %v2285, 1.0
      %v2350 = vadd.f32 %v2286, 1.0
      %v2351 = vadd.f32 %v2287, 1.0
      %v2352 = vadd.f32 %v2288, 1.0
      %v2353 = vadd.f32 %v2289, 1.0
      %v2354 = vadd.f32 %v2290, 1.0
      %v2355 = vadd.f32 %v2291, 1.0
      %v2356 = vadd.f32 %v2292, 1.0
      %v2357 = vadd.f32 %v2293, 1.0
      %v2358 = vadd.f32 %v2294, 1.0
      %v2359 = vadd.f32 %v2295, 1.0
      %v2360 = vadd.f32 %v2296, 1.0
      %v2361 = vadd.f32 %v2297, 1.0
      %v2362 = vadd.f32 %v2298, 1.0
      %v2363 = vadd.f32 %v2299, 1.0
      %v2364 = vadd.f32 %v2300, 1.0
      %v2365 = vadd.f32 %v2301, 1.0
      %v2366 = vadd.f32 %v2302, 1.0
      %v2367 = vadd.f32 %v2303, 1.0
      %v2368 = vadd.f32 %v2304, 1.0
      %v2369 = vadd.f32 %v2305, 1.0
      %v2370 = vadd.f32 %v2306, 1.0
      %v2371 = vadd.f32 %v2307, 1.0
      %v2372 = vadd.f32 %v2308, 1.0
      %v2373 = vadd.f32 %v2309, 1.0
      %v2374 = vadd.f32 %v2310, 1.0
      %v2375 = vadd.f32 %v2311, 1.0
      %v2376 = vadd.f32 %v2312, 1.0
      %v2377 = vadd.f32 %v2313, 1.0
      %v2378 = vadd.f32 %v2314, 1.0
      %v2379 = vadd.f32 %v2315, 1.0
      %v2380 = vadd.f32 %v2316, 1.0
      %v2381 = vadd.f32 %v2317, 1.0
      %v2382 = vadd.f32 %v2318, 1.0
      %v2383 = vadd.f32 %v2319, 1.0
      %v2384 = vadd.f32 %v2320, 1.0
      %v2385 = vadd.f32 %v2321, 1.0
      %v2386 = vadd.f32 %v2322, 1.0
      %v2387 = vadd.f32 %v2323, 1.0
      %v2388 = vadd.f32 %v2324, 1.0
      %v2389 = vadd.f32 %v2325, 1.0
      %v2390 = vadd.f32 %v2326, 1.0
      %v2391 = vmul.f32 %v2327, 0.5
      %v2392 = vmul.f32 %v2328, 0.5
      %v2393 = vmul.f32 %v2329, 0.5
      %v2394 = vmul.f32 %v2330, 0.5
      %v2395 = vmul.f32 %v2331, 0.5
      %v2396 = vmul.f32 %v2332, 0.5
      %v2397 = vmul.f32 %v2333, 0.5
      %v2398 = vmul.f32 %v2334, 0.5
      %v2399 = vmul.f32 %v2335, 0.5
      %v2400 = vmul.f32 %v2336, 0.5
      %v2401 = vmul.f32 %v2337, 0.5
      %v2402 = vmul.f32 %v2338, 0.5
      %v2403 = vmul.f32 %v2339, 0.5
      %v2404 = vmul.f32 %v2340, 0.5
      %v2405 = vmul.f32 %v2341, 0.5
      %v2406 = vmul.f32 %v2342, 0.5
      %v2407 = vmul.f32 %v2343, 0.5
      %v2408 = vmul.f32 %v2344, 0.5
      %v2409 = vmul.f32 %v2345, 0.5
      %v2410 = vmul.f32 %v2346, 0.5
      %v2411 = vmul.f32 %v2347, 0.5
      %v2412 = vmul.f32 %v2348, 0.5
      %v2413 = vmul.f32 %v2349, 0.5
      %v2414 = vmul.f32 %v2350, 0.5
      %v2415 = vmul.f32 %v2351, 0.5
      %v2416 = vmul.f32 %v2352, 0.5
      %v2417 = vmul.f32 %v2353, 0.5
      %v2418 = vmul.f32 %v2354, 0.5
      %v2419 = vmul.f32 %v2355, 0.5
      %v2420 = vmul.f32 %v2356, 0.5
      %v2421 = vmul.f32 %v2357, 0.5
      %v2422 = vmul.f32 %v2358, 0.5
      %v2423 = vmul.f32 %v2359, 0.5
      %v2424 = vmul.f32 %v2360, 0.5
      %v2425 = vmul.f32 %v2361, 0.5
      %v2426 = vmul.f32 %v2362, 0.5
      %v2427 = vmul.f32 %v2363, 0.5
      %v2428 = vmul.f32 %v2364, 0.5
      %v2429 = vmul.f32 %v2365, 0.5
      %v2430 = vmul.f32 %v2366, 0.5
      %v2431 = vmul.f32 %v2367, 0.5
      %v2432 = vmul.f32 %v2368, 0.5
      %v2433 = vmul.f32 %v2369, 0.5
      %v2434 = vmul.f32 %v2370, 0.5
      %v2435 = vmul.f32 %v2371, 0.5
      %v2436 = vmul.f32 %v2372, 0.5
      %v2437 = vmul.f32 %v2373, 0.5
      %v2438 = vmul.f32 %v2374, 0.5
      %v2439 = vmul.f32 %v2375, 0.5
      %v2440 = vmul.f32 %v2376, 0.5
      %v2441 = vmul.f32 %v2377, 0.5
      %v2442 = vmul.f32 %v2378, 0.5
      %v2443 = vmul.f32 %v2379, 0.5
      %v2444 = vmul.f32 %v2380, 0.5
      %v2445 = vmul.f32 %v2381, 0.5
      %v2446 = vmul.f32 %v2382, 0.5
      %v2447 = vmul.f32 %v2383, 0.5
      %v2448 = vmul.f32 %v2384, 0.5
      %v2449 = vmul.f32 %v2385, 0.5
      %v2450 = vmul.f32 %v2386, 0.5
      %v2451 = vmul.f32 %v2387, 0.5
      %v2452 = vmul.f32 %v2388, 0.5
      %v2453 = vmul.f32 %v2389, 0.5
      %v2454 = vmul.f32 %v2390, 0.5
      %v2455 = vmul.f32 %v417, %v2391
      %v2456 = vmul.f32 %v418, %v2392
      %v2457 = vmul.f32 %v419, %v2393
      %v2458 = vmul.f32 %v420, %v2394
      %v2459 = vmul.f32 %v421, %v2395
      %v2460 = vmul.f32 %v422, %v2396
      %v2461 = vmul.f32 %v423, %v2397
      %v2462 = vmul.f32 %v424, %v2398
      %v2463 = vmul.f32 %v425, %v2399
      %v2464 = vmul.f32 %v426, %v2400
      %v2465 = vmul.f32 %v427, %v2401
      %v2466 = vmul.f32 %v428, %v2402
      %v2467 = vmul.f32 %v429, %v2403
      %v2468 = vmul.f32 %v430, %v2404
      %v2469 = vmul.f32 %v431, %v2405
      %v2470 = vmul.f32 %v432, %v2406
      %v2471 = vmul.f32 %v433, %v2407
      %v2472 = vmul.f32 %v434, %v2408
      %v2473 = vmul.f32 %v435, %v2409
      %v2474 = vmul.f32 %v436, %v2410
      %v2475 = vmul.f32 %v437, %v2411
      %v2476 = vmul.f32 %v438, %v2412
      %v2477 = vmul.f32 %v439, %v2413
      %v2478 = vmul.f32 %v440, %v2414
      %v2479 = vmul.f32 %v441, %v2415
      %v2480 = vmul.f32 %v442, %v2416
      %v2481 = vmul.f32 %v443, %v2417
      %v2482 = vmul.f32 %v444, %v2418
      %v2483 = vmul.f32 %v445, %v2419
      %v2484 = vmul.f32 %v446, %v2420
      %v2485 = vmul.f32 %v447, %v2421
      %v2486 = vmul.f32 %v448, %v2422
      %v2487 = vmul.f32 %v449, %v2423
      %v2488 = vmul.f32 %v450, %v2424
      %v2489 = vmul.f32 %v451, %v2425
      %v2490 = vmul.f32 %v452, %v2426
      %v2491 = vmul.f32 %v453, %v2427
      %v2492 = vmul.f32 %v454, %v2428
      %v2493 = vmul.f32 %v455, %v2429
      %v2494 = vmul.f32 %v456, %v2430
      %v2495 = vmul.f32 %v457, %v2431
      %v2496 = vmul.f32 %v458, %v2432
      %v2497 = vmul.f32 %v459, %v2433
      %v2498 = vmul.f32 %v460, %v2434
      %v2499 = vmul.f32 %v461, %v2435
      %v2500 = vmul.f32 %v462, %v2436
      %v2501 = vmul.f32 %v463, %v2437
      %v2502 = vmul.f32 %v464, %v2438
      %v2503 = vmul.f32 %v465, %v2439
      %v2504 = vmul.f32 %v466, %v2440
      %v2505 = vmul.f32 %v467, %v2441
      %v2506 = vmul.f32 %v468, %v2442
      %v2507 = vmul.f32 %v469, %v2443
      %v2508 = vmul.f32 %v470, %v2444
      %v2509 = vmul.f32 %v471, %v2445
      %v2510 = vmul.f32 %v472, %v2446
      %v2511 = vmul.f32 %v473, %v2447
      %v2512 = vmul.f32 %v474, %v2448
      %v2513 = vmul.f32 %v475, %v2449
      %v2514 = vmul.f32 %v476, %v2450
      %v2515 = vmul.f32 %v477, %v2451
      %v2516 = vmul.f32 %v478, %v2452
      %v2517 = vmul.f32 %v479, %v2453
      %v2518 = vmul.f32 %v480, %v2454
      %2519 = vst [vmem:[%s251] sm:$0xff] %v2455
      %2520 = vst [vmem:[%s251 + $0x8] sm:$0xff] %v2456
      %2521 = vst [vmem:[%s251 + $0x10] sm:$0xff] %v2457
      %2522 = vst [vmem:[%s251 + $0x18] sm:$0xff] %v2458
      %2523 = vst [vmem:[%s251 + $0x20] sm:$0xff] %v2459
      %2524 = vst [vmem:[%s251 + $0x28] sm:$0xff] %v2460
      %2525 = vst [vmem:[%s251 + $0x30] sm:$0xff] %v2461
      %2526 = vst [vmem:[%s251 + $0x38] sm:$0xff] %v2462
      %2527 = vst [vmem:[%s251 + $0x40] sm:$0xff] %v2463
      %2528 = vst [vmem:[%s251 + $0x48] sm:$0xff] %v2464
      %2529 = vst [vmem:[%s251 + $0x50] sm:$0xff] %v2465
      %2530 = vst [vmem:[%s251 + $0x58] sm:$0xff] %v2466
      %2531 = vst [vmem:[%s251 + $0x60] sm:$0xff] %v2467
      %2532 = vst [vmem:[%s251 + $0x68] sm:$0xff] %v2468
      %2533 = vst [vmem:[%s251 + $0x70] sm:$0xff] %v2469
      %2534 = vst [vmem:[%s251 + $0x78] sm:$0xff] %v2470
      %2535 = vst [vmem:[%s251 + $0x80] sm:$0xff] %v2471
      %2536 = vst [vmem:[%s251 + $0x88] sm:$0xff] %v2472
      %2537 = vst [vmem:[%s251 + $0x90] sm:$0xff] %v2473
      %2538 = vst [vmem:[%s251 + $0x98] sm:$0xff] %v2474
      %2539 = vst [vmem:[%s251 + $0xa0] sm:$0xff] %v2475
      %2540 = vst [vmem:[%s251 + $0xa8] sm:$0xff] %v2476
      %2541 = vst [vmem:[%s251 + $0xb0] sm:$0xff] %v2477
      %2542 = vst [vmem:[%s251 + $0xb8] sm:$0xff] %v2478
      %2543 = vst [vmem:[%s251 + $0xc0] sm:$0xff] %v2479
      %2544 = vst [vmem:[%s251 + $0xc8] sm:$0xff] %v2480
      %2545 = vst [vmem:[%s251 + $0xd0] sm:$0xff] %v2481
      %2546 = vst [vmem:[%s251 + $0xd8] sm:$0xff] %v2482
      %2547 = vst [vmem:[%s251 + $0xe0] sm:$0xff] %v2483
      %2548 = vst [vmem:[%s251 + $0xe8] sm:$0xff] %v2484
      %2549 = vst [vmem:[%s251 + $0xf0] sm:$0xff] %v2485
      %2550 = vst [vmem:[%s251 + $0xf8] sm:$0xff] %v2486
      %2551 = vst [vmem:[%s251 + $0x100] sm:$0xff] %v2487
      %2552 = vst [vmem:[%s251 + $0x108] sm:$0xff] %v2488
      %2553 = vst [vmem:[%s251 + $0x110] sm:$0xff] %v2489
      %2554 = vst [vmem:[%s251 + $0x118] sm:$0xff] %v2490
      %2555 = vst [vmem:[%s251 + $0x120] sm:$0xff] %v2491
      %2556 = vst [vmem:[%s251 + $0x128] sm:$0xff] %v2492
      %2557 = vst [vmem:[%s251 + $0x130] sm:$0xff] %v2493
      %2558 = vst [vmem:[%s251 + $0x138] sm:$0xff] %v2494
      %2559 = vst [vmem:[%s251 + $0x140] sm:$0xff] %v2495
      %2560 = vst [vmem:[%s251 + $0x148] sm:$0xff] %v2496
      %2561 = vst [vmem:[%s251 + $0x150] sm:$0xff] %v2497
      %2562 = vst [vmem:[%s251 + $0x158] sm:$0xff] %v2498
      %2563 = vst [vmem:[%s251 + $0x160] sm:$0xff] %v2499
      %2564 = vst [vmem:[%s251 + $0x168] sm:$0xff] %v2500
      %2565 = vst [vmem:[%s251 + $0x170] sm:$0xff] %v2501
      %2566 = vst [vmem:[%s251 + $0x178] sm:$0xff] %v2502
      %2567 = vst [vmem:[%s251 + $0x180] sm:$0xff] %v2503
      %2568 = vst [vmem:[%s251 + $0x188] sm:$0xff] %v2504
      %2569 = vst [vmem:[%s251 + $0x190] sm:$0xff] %v2505
      %2570 = vst [vmem:[%s251 + $0x198] sm:$0xff] %v2506
      %2571 = vst [vmem:[%s251 + $0x1a0] sm:$0xff] %v2507
      %2572 = vst [vmem:[%s251 + $0x1a8] sm:$0xff] %v2508
      %2573 = vst [vmem:[%s251 + $0x1b0] sm:$0xff] %v2509
      %2574 = vst [vmem:[%s251 + $0x1b8] sm:$0xff] %v2510
      %2575 = vst [vmem:[%s251 + $0x1c0] sm:$0xff] %v2511
      %2576 = vst [vmem:[%s251 + $0x1c8] sm:$0xff] %v2512
      %2577 = vst [vmem:[%s251 + $0x1d0] sm:$0xff] %v2513
      %2578 = vst [vmem:[%s251 + $0x1d8] sm:$0xff] %v2514
      %2579 = vst [vmem:[%s251 + $0x1e0] sm:$0xff] %v2515
      %2580 = vst [vmem:[%s251 + $0x1e8] sm:$0xff] %v2516
      %2581 = vst [vmem:[%s251 + $0x1f0] sm:$0xff] %v2517
      %2582 = vst [vmem:[%s251 + $0x1f8] sm:$0xff] %v2518
      %p2583 = scmp.lt.s32.totalorder %s17, 1
      %s2584 = scalar_select %p2583, %s17, 1
      %s2585 = smul.addr %s2584, 64
      %s2586 = smul.addr %s2585, 8
      %s2587 = scalar_lea.vmem %s6, %s2586
      // Predicated region
      $region45: #{_psa_forward.1} parent=43 // pred_check
        %p2588 = pneg %p166
      $region46: #{_psa_forward.1} parent=43 // pred_check_branch
        %2590 = sbr.rel (%p2588) target = $region48
      $region47: #{_psa_forward.1} parent=43 // pred_region
        _
      $region48: #{_psa_forward.1} parent=43 // pred_fallthru
        _
    $region44: #{_psa_forward.1} parent=5 // pred_fallthru
      _
    %p2591 = scmp.le.s32.totalorder 2, %s12
    // Predicated region
    $region49: #{_psa_forward.1} parent=5 // pred_check
      %p2592 = pneg %p2591
    $region50: #{_psa_forward.1} parent=5 // pred_check_branch
      %2594 = sbr.rel (%p2592) target = $region52
    $region51: #{_psa_forward.1} parent=5 // pred_region
      %s2595 = ssub.s32 %s12, 2
      // Predicated region
      $region53: #{_psa_forward.1} parent=51 // pred_check
        %p2596 = pneg %p172
      $region54: #{_psa_forward.1} parent=51 // pred_check_branch
        %2598 = sbr.rel (%p2596) target = $region56
      $region55: #{_psa_forward.1} parent=51 // pred_region
        %p2599 = scmp.lt.s32.totalorder %s18, 1
        %s2600 = scalar_select %p2599, %s18, 1
        %s2601 = smul.addr %s2600, 64
        %s2602 = smul.addr %s2601, 8
        %s2603 = scalar_lea.vmem %s6, %s2602
      $region56: #{_psa_forward.1} parent=51 // pred_fallthru
        _
    $region52: #{_psa_forward.1} parent=5 // pred_fallthru
      _
  $region6: #{_psa_forward.1} parent=0 // loop_footer
    %s16 = sadd.s32 1, %s12
  $region7: #{_psa_forward.1} parent=0 // loop_footer_branch
    %11 = sbr.rel target = $region3
  $region8: #{_psa_forward.1} parent=0 // loop_exit
    _

</llo_original>
